<compile_context>
chip_gen: v6e
topology: v6e:2x2x1
jax: 0.10.0
libtpu: 0.0.40
codegen_flags: <defaults>
</compile_context>

<pallas_src>
import jax
import jax.numpy as jnp
from jax.experimental import pallas as pl
from jax.experimental.pallas import tpu as pltpu


def _round_up(x, m):
    return ((x + m - 1) // m) * m


def _choose_tb(B, tb_max):
    """Batch tile: multiple of 8, >= ~4 grid steps when B is large, <= tb_max."""
    tb = _round_up(max(-(-B // 4), 8), 8)          # aim for ~4 steps, min 8 rows
    return min(tb, tb_max, _round_up(B, 8))


def encoder_kernel(x_ref, wh_ref, bh_ref, wz_ref, bz_ref, out_ref):
    # Cast the x tile to the weight dtype in-kernel (no-op for f32, VPU cast for
    # bf16) -- x stays f32 in HBM so no extra wrapper pass over it.
    x = x_ref[...].astype(wh_ref.dtype)
    # hidden = tanh(x @ W_h + b_h): MXU matmul (f32 acc) + f32 bias + f32 tanh (EUP)
    h = jnp.tanh(
        jnp.dot(x, wh_ref[...], preferred_element_type=jnp.float32) + bh_ref[...]
    )
    # fused [mean | std | pad] = h @ [W_mu | W_std | 0] + [b_mu | b_std | 0]
    # single lane-dense (128-wide) unmasked output store.
    out_ref[...] = (
        jnp.dot(h.astype(wz_ref.dtype), wz_ref[...],
                preferred_element_type=jnp.float32)
        + bz_ref[...]
    )


def encoder_forward(x_nchw, params, *, matmul_dtype=jnp.float32, tb_max=1024):
    """x_nchw: [B, 1, 28, 28] float32 -> (mean [B, Z], std [B, Z])."""
    B = x_nchw.shape[0]
    x_flat = x_nchw.reshape(B, -1)                       # same as torch .view(B, -1)
    in_dim = x_flat.shape[1]                             # 784 (no K padding)

    wh, bh = params["wh"], params["bh"]                  # [in, H], [1, H]
    wmu, bmu = params["wmu"], params["bmu"]              # [H, Z], [1, Z]
    wstd, bstd = params["wstd"], params["bstd"]          # [H, Z], [1, Z]
    H = wh.shape[1]
    Z = wmu.shape[1]

    # ---- one-time parameter packing (fused mu/std + lane-dense output) ------
    out_pad = _round_up(2 * Z, 128)                      # 40 -> 128 lane-dense slab
    wh_p = wh.astype(matmul_dtype)                       # weights only are cast
    wz_p = jnp.pad(jnp.concatenate([wmu, wstd], axis=1),
                   ((0, 0), (0, out_pad - 2 * Z))).astype(matmul_dtype)
    bh_p = bh.astype(jnp.float32)
    bz_p = jnp.pad(jnp.concatenate([bmu, bstd], axis=1),
                   ((0, 0), (0, out_pad - 2 * Z))).astype(jnp.float32)

    # ---- batch tiling --------------------------------------------------------
    TB = _choose_tb(B, tb_max)
    B_pad = _round_up(B, TB)
    x_in = x_flat if B_pad == B else jnp.pad(x_flat, ((0, B_pad - B), (0, 0)))

    # VMEM budget: double-buffered x & out tiles + (constant-index) weights + slack.
    w_item = jnp.dtype(matmul_dtype).itemsize
    x_tile_bytes = TB * in_dim * 4                       # x tile stays f32
    out_tile_bytes = TB * out_pad * 4
    weight_bytes = (in_dim * H + H * out_pad) * w_item + (H + out_pad) * 4
    vmem_limit = int(min(64 << 20,
                         2 * (x_tile_bytes + out_tile_bytes)
                         + 2 * weight_bytes + (8 << 20)))

    cost = pl.CostEstimate(
        flops=2 * B_pad * (in_dim * H + H * out_pad),
        transcendentals=B_pad * H,
        bytes_accessed=(B_pad * in_dim * 4 + B_pad * out_pad * 4 + weight_bytes),
    )

    grid = (B_pad // TB,)
    out = pl.pallas_call(
        encoder_kernel,
        out_shape=jax.ShapeDtypeStruct((B_pad, out_pad), jnp.float32),
        grid=grid,
        in_specs=[
            pl.BlockSpec((TB, in_dim), lambda i: (i, 0)),      # x tile (double-buffered)
            pl.BlockSpec((in_dim, H), lambda i: (0, 0)),       # W_h  (VMEM-resident)
            pl.BlockSpec((1, H), lambda i: (0, 0)),            # b_h
            pl.BlockSpec((H, out_pad), lambda i: (0, 0)),      # fused [W_mu|W_std|0]
            pl.BlockSpec((1, out_pad), lambda i: (0, 0)),      # fused [b_mu|b_std|0]
        ],
        out_specs=pl.BlockSpec((TB, out_pad), lambda i: (i, 0)),
        compiler_params=pltpu.CompilerParams(
            dimension_semantics=("parallel",),                 # megacore/2-TC sharding
            vmem_limit_bytes=vmem_limit,
        ),
        cost_estimate=cost,
    )(x_in, wh_p, bh_p, wz_p, bz_p)

    # One slice of the useful lanes, then a cheap split into mean/std.
    mz = out[:B, :2 * Z]
    mean = mz[:, :Z]
    std = mz[:, Z:]
    # TODO(synk): std is the raw linear output (can be <= 0), matching the
    # reference forward; downstream reparameterization must handle this.
    return mean, std


def init_params(key, in_dim=784, hidden_dim=500, z_dim=20):
    """Deterministic synthetic parameters (PyTorch Linear shapes, stored transposed)."""
    k1, k2, k3, k4, k5, k6 = jax.random.split(key, 6)
    s_h = 1.0 / jnp.sqrt(in_dim)
    s_z = 1.0 / jnp.sqrt(hidden_dim)
    return {
        "wh": jax.random.uniform(k1, (in_dim, hidden_dim), jnp.float32, -s_h, s_h),
        "bh": jax.random.uniform(k2, (1, hidden_dim), jnp.float32, -s_h, s_h),
        "wmu": jax.random.uniform(k3, (hidden_dim, z_dim), jnp.float32, -s_z, s_z),
        "bmu": jax.random.uniform(k4, (1, z_dim), jnp.float32, -s_z, s_z),
        "wstd": jax.random.uniform(k5, (hidden_dim, z_dim), jnp.float32, -s_z, s_z),
        "bstd": jax.random.uniform(k6, (1, z_dim), jnp.float32, -s_z, s_z),
    }


if __name__ == "__main__":
    key = jax.random.PRNGKey(0)
    kx, kp = jax.random.split(key)

    B, H, Z = 16, 500, 20                                # spec defaults, small batch
    x = jax.random.normal(kx, (B, 1, 28, 28), jnp.float32)   # NCHW -> flattens to 784
    params = init_params(kp, in_dim=784, hidden_dim=H, z_dim=Z)

    # plain-JAX reference (f32)
    x_flat = x.reshape(B, -1)
    h_ref = jnp.tanh(x_flat @ params["wh"] + params["bh"])
    mean_ref = h_ref @ params["wmu"] + params["bmu"]
    std_ref = h_ref @ params["wstd"] + params["bstd"]

    # f32 path (tight tolerance)
    mean, std = encoder_forward(x, params, matmul_dtype=jnp.float32)
    jax.block_until_ready((mean, std))
    assert mean.shape == (B, Z) and std.shape == (B, Z)
    assert jnp.allclose(mean, mean_ref, atol=1e-5, rtol=1e-5)
    assert jnp.allclose(std, std_ref, atol=1e-5, rtol=1e-5)

    # bf16 MXU-operand path (weights pre-cast; x cast in-kernel; f32 accumulation)
    mean_bf, std_bf = encoder_forward(x, params, matmul_dtype=jnp.bfloat16)
    jax.block_until_ready((mean_bf, std_bf))
    assert jnp.allclose(mean_bf, mean_ref, atol=5e-2, rtol=5e-2)
    assert jnp.allclose(std_bf, std_ref, atol=5e-2, rtol=5e-2)

    print("KERNEL_OK")
</pallas_src>

<mosaic_0001>
module attributes {stable_mosaic.version = 11 : i64} {
  func.func @encoder_kernel(%arg0: i32, %arg1: memref<8x784xf32, #tpu.memory_space<vmem>>, %arg2: memref<784x500xf32, #tpu.memory_space<vmem>>, %arg3: memref<1x500xf32, #tpu.memory_space<vmem>>, %arg4: memref<500x128xf32, #tpu.memory_space<vmem>>, %arg5: memref<1x128xf32, #tpu.memory_space<vmem>>, %arg6: memref<8x128xf32, #tpu.memory_space<vmem>>) attributes {dimension_semantics = [#tpu.dimension_semantics<parallel>], iteration_bounds = array<i64: 2>, scalar_prefetch = 0 : i64, scratch_operands = 0 : i64, tpu.core_type = #tpu.core_type<tc>, window_params = [{transform_indices = @transform_0, window_bounds = array<i64: 8, 784>}, {pipeline_mode = #tpu.pipeline_mode<synchronous>, transform_indices = @transform_1, window_bounds = array<i64: 784, 500>}, {pipeline_mode = #tpu.pipeline_mode<synchronous>, transform_indices = @transform_2, window_bounds = array<i64: 1, 500>}, {pipeline_mode = #tpu.pipeline_mode<synchronous>, transform_indices = @transform_3, window_bounds = array<i64: 500, 128>}, {pipeline_mode = #tpu.pipeline_mode<synchronous>, transform_indices = @transform_4, window_bounds = array<i64: 1, 128>}, {transform_indices = @transform_5, window_bounds = array<i64: 8, 128>}]} {
    %c0 = arith.constant 0 : index
    %c0_0 = arith.constant 0 : index
    %0 = vector.load %arg1[%c0, %c0_0] : memref<8x784xf32, #tpu.memory_space<vmem>>, vector<8x784xf32>
    %c0_1 = arith.constant 0 : index
    %c0_2 = arith.constant 0 : index
    %1 = vector.load %arg2[%c0_1, %c0_2] : memref<784x500xf32, #tpu.memory_space<vmem>>, vector<784x500xf32>
    %cst = arith.constant dense<0.000000e+00> : vector<8x500xf32>
    %2 = tpu.matmul %0, %1, %cst {dimension_numbers = #tpu.dot_dimension_numbers<[1], [0], [0], [1], [0, 0, 1, 1], [], []>} : vector<8x784xf32>, vector<784x500xf32>, vector<8x500xf32> -> vector<8x500xf32>
    %c0_3 = arith.constant 0 : index
    %c0_4 = arith.constant 0 : index
    %3 = vector.load %arg3[%c0_3, %c0_4] : memref<1x500xf32, #tpu.memory_space<vmem>>, vector<1x500xf32>
    %4 = vector.broadcast %3 : vector<1x500xf32> to vector<8x500xf32>
    %5 = arith.addf %2, %4 : vector<8x500xf32>
    %6 = math.tanh %5 : vector<8x500xf32>
    %c0_5 = arith.constant 0 : index
    %c0_6 = arith.constant 0 : index
    %7 = vector.load %arg4[%c0_5, %c0_6] : memref<500x128xf32, #tpu.memory_space<vmem>>, vector<500x128xf32>
    %cst_7 = arith.constant dense<0.000000e+00> : vector<8x128xf32>
    %8 = tpu.matmul %6, %7, %cst_7 {dimension_numbers = #tpu.dot_dimension_numbers<[1], [0], [0], [1], [0, 0, 1, 1], [], []>} : vector<8x500xf32>, vector<500x128xf32>, vector<8x128xf32> -> vector<8x128xf32>
    %c0_8 = arith.constant 0 : index
    %c0_9 = arith.constant 0 : index
    %9 = vector.load %arg5[%c0_8, %c0_9] : memref<1x128xf32, #tpu.memory_space<vmem>>, vector<1x128xf32>
    %10 = vector.broadcast %9 : vector<1x128xf32> to vector<8x128xf32>
    %11 = arith.addf %8, %10 : vector<8x128xf32>
    %c0_10 = arith.constant 0 : index
    %c0_11 = arith.constant 0 : index
    %12 = vector.load %arg6[%c0_10, %c0_11] : memref<8x128xf32, #tpu.memory_space<vmem>>, vector<8x128xf32>
    tpu.vector_store %arg6[%c0_10, %c0_11], %11 {strides = array<i32>} : memref<8x128xf32, #tpu.memory_space<vmem>>, vector<8x128xf32>,
    return
  }
  func.func @transform_0(%arg0: i32) -> (i32, i32) {
    %c0_i32 = arith.constant 0 : i32
    %c0_i32_0 = arith.constant 0 : i32
    return %arg0, %c0_i32 : i32, i32
  }
  func.func @transform_1(%arg0: i32) -> (i32, i32) {
    %c0_i32 = arith.constant 0 : i32
    %c0_i32_0 = arith.constant 0 : i32
    %c0_i32_1 = arith.constant 0 : i32
    return %c0_i32, %c0_i32_0 : i32, i32
  }
  func.func @transform_2(%arg0: i32) -> (i32, i32) {
    %c0_i32 = arith.constant 0 : i32
    %c0_i32_0 = arith.constant 0 : i32
    %c0_i32_1 = arith.constant 0 : i32
    return %c0_i32, %c0_i32_0 : i32, i32
  }
  func.func @transform_3(%arg0: i32) -> (i32, i32) {
    %c0_i32 = arith.constant 0 : i32
    %c0_i32_0 = arith.constant 0 : i32
    %c0_i32_1 = arith.constant 0 : i32
    return %c0_i32, %c0_i32_0 : i32, i32
  }
  func.func @transform_4(%arg0: i32) -> (i32, i32) {
    %c0_i32 = arith.constant 0 : i32
    %c0_i32_0 = arith.constant 0 : i32
    %c0_i32_1 = arith.constant 0 : i32
    return %c0_i32, %c0_i32_0 : i32, i32
  }
  func.func @transform_5(%arg0: i32) -> (i32, i32) {
    %c0_i32 = arith.constant 0 : i32
    %c0_i32_0 = arith.constant 0 : i32
    return %arg0, %c0_i32 : i32, i32
  }
}

</mosaic_0001>

<llo_original>
// kernel: tpu_custom_call.1
$region0: #{tpu_custom_call.1}
  #allocation0 [shape = 'u32[]', space=smem, size = 0x4, offset = 0x4, fixed_abs, tag = 'smem constant byte address 0x4 - core index']
  #allocation1 [shape = 'u32[144,128]{1,0:T(1,128)}', space=vmem, size = 0x12000, scoped, tag = 'internal scratch']
  %s0 = inlined_call_operand.hbm [shape: f32[16,784], index: 0, kind: input, shape index: {}]
  %s1 = inlined_call_operand.hbm [shape: f32[784,500], index: 1, kind: input, shape index: {}]
  %s2 = inlined_call_operand.hbm [shape: f32[1,500], index: 2, kind: input, shape index: {}]
  %s3 = inlined_call_operand.hbm [shape: f32[500,128], index: 3, kind: input, shape index: {}]
  %s4 = inlined_call_operand.hbm [shape: f32[1,128], index: 4, kind: input, shape index: {}]
  %s5 = inlined_call_operand.hbm [shape: f32[16,128], index: 5, kind: output, shape index: {}]
  %s6 = sld [smem:[#allocation0]]
  $region73: #{tpu_custom_call.1} parent=0
    _
  %s8 = ssub.s32 1, %s6
  %s9 = scalar_select 0, %s8, %s6
  $region1: #{tpu_custom_call.1} parent=0
    #allocation2 [shape = 'u8[57344]{0}', space=vmem, size = 0xe000, scoped, tag = 'input window, operand 0']
    #allocation3 [shape = 's32[2]{0}', space=sflag, size = 0x8, scoped, tag = 'scoped memory for tpu_custom_call.1']
    #allocation4 [shape = 's32[2]{0}', space=sflag, size = 0x8, scoped, tag = 'scoped memory for tpu_custom_call.1']
    #allocation5 [shape = 'u8[1605632]{0}', space=vmem, size = 0x188000, scoped, tag = 'input window, operand 1, single buffered']
    #allocation6 [shape = 's32[1]{0}', space=sflag, size = 0x4, scoped, tag = 'scoped memory for tpu_custom_call.1']
    #allocation7 [shape = 'u8[2048]{0}', space=vmem, size = 0x800, scoped, tag = 'input window, operand 2, single buffered']
    #allocation8 [shape = 'u8[258048]{0}', space=vmem, size = 0x3f000, scoped, tag = 'input window, operand 3, single buffered']
    #allocation9 [shape = 's32[1]{0}', space=sflag, size = 0x4, scoped, tag = 'scoped memory for tpu_custom_call.1']
    #allocation10 [shape = 'u8[512]{0}', space=vmem, size = 0x400, scoped, tag = 'input window, operand 4, single buffered']
    #allocation11 [shape = 'u8[8192]{0}', space=vmem, size = 0x2000, scoped, tag = 'output window, operand 0']
    %10 = vsyncpa [#allocation3], 0
    %s11 = scalar_lea.sflag [#allocation3], 1
    %12 = vsyncpa %s11, 0
    %13 = vsyncpa [#allocation6], 0
    %14 = vsyncpa [#allocation9], 0
    %15 = vsyncpa [#allocation4], 0
    %s16 = scalar_lea.sflag [#allocation4], 1
    %17 = vsyncpa %s16, 0
    loop: start=0, step=1, limit=4
    $region2: #{tpu_custom_call.1} parent=1 // loop_pre_header
      _
    $region3: #{tpu_custom_call.1} parent=1 // loop_header
      %s19 = sphi 0, %s23
      %p20 = scmp.ge.s32.totalorder %s19, 4
      %s29 = sphi 0, %s31
      %s32 = sphi 0, %s29
      %s33 = sphi 0, %s32
      %s49 = sphi 0, %s33
      %s53 = sphi 0, %s53
      %s55 = sphi 0, %s53
      %s56 = sphi 0, %s55
      %s70 = sphi 0, %s56
      %s74 = sphi 0, %s74
      %s76 = sphi 0, %s74
      %s77 = sphi 0, %s76
      %s91 = sphi 0, %s77
      %s95 = sphi 0, %s95
      %s97 = sphi 0, %s95
      %s98 = sphi 0, %s97
      %s112 = sphi 0, %s98
      %s116 = sphi 0, %s116
      %s118 = sphi 0, %s116
      %s119 = sphi 0, %s118
      %s133 = sphi 0, %s119
      %s139 = sphi 0, %s141
      %s142 = sphi 0, %s139
      %s143 = sphi 0, %s142
      %s159 = sphi 0, %s143
    $region4: #{tpu_custom_call.1} parent=1 // loop_header_branch
      %22 = sbr.rel (%p20) target = $region8
    $region5: #{tpu_custom_call.1} parent=1 // loop_body
      %s24 = ssub.s32 %s19, 1
      %s25 = ssub.s32 %s19, 2
      %s26 = sadd.s32 %s19, 1
      %s27 = ssub.s32 %s19, %s26
      %p28 = scmp.eq.s32.totalorder %s27, 0
      %s30 = sadd.s32 %s29, 1
      %s31 = scalar_select %p28, %s29, %s30
      %p34 = pneg %p28
      %p35 = scmp.eq.s32.totalorder %s19, 1
      %p36 = por %p34, %p35
      %p37 = scmp.ne.s32.totalorder %s29, %s32
      %p38 = scmp.eq.s32.totalorder %s19, 0
      %p39 = por %p37, %p38
      %p40 = scmp.ne.s32.totalorder %s29, %s32
      %p41 = scmp.eq.s32.totalorder %s24, 1
      %p42 = por %p40, %p41
      %p43 = scmp.ne.s32.totalorder %s32, %s33
      %p44 = scmp.eq.s32.totalorder %s24, 0
      %p45 = por %p43, %p44
      %p46 = scmp.ne.s32.totalorder %s32, %s33
      %p47 = scmp.eq.s32.totalorder %s25, 1
      %p48 = por %p46, %p47
      %p50 = scmp.ne.s32.totalorder %s33, %s49
      %p51 = scmp.eq.s32.totalorder %s25, 0
      %p52 = por %p50, %p51
      %s54 = sadd.s32 %s53, 1
      %p57 = scmp.eq.s32.totalorder %s19, 1
      %p58 = scmp.ne.s32.totalorder %s53, %s55
      %p59 = scmp.eq.s32.totalorder %s19, 0
      %p60 = por %p58, %p59
      %p61 = scmp.ne.s32.totalorder %s53, %s55
      %p62 = scmp.eq.s32.totalorder %s24, 1
      %p63 = por %p61, %p62
      %p64 = scmp.ne.s32.totalorder %s55, %s56
      %p65 = scmp.eq.s32.totalorder %s24, 0
      %p66 = por %p64, %p65
      %p67 = scmp.ne.s32.totalorder %s55, %s56
      %p68 = scmp.eq.s32.totalorder %s25, 1
      %p69 = por %p67, %p68
      %p71 = scmp.ne.s32.totalorder %s56, %s70
      %p72 = scmp.eq.s32.totalorder %s25, 0
      %p73 = por %p71, %p72
      %s75 = sadd.s32 %s74, 1
      %p78 = scmp.eq.s32.totalorder %s19, 1
      %p79 = scmp.ne.s32.totalorder %s74, %s76
      %p80 = scmp.eq.s32.totalorder %s19, 0
      %p81 = por %p79, %p80
      %p82 = scmp.ne.s32.totalorder %s74, %s76
      %p83 = scmp.eq.s32.totalorder %s24, 1
      %p84 = por %p82, %p83
      %p85 = scmp.ne.s32.totalorder %s76, %s77
      %p86 = scmp.eq.s32.totalorder %s24, 0
      %p87 = por %p85, %p86
      %p88 = scmp.ne.s32.totalorder %s76, %s77
      %p89 = scmp.eq.s32.totalorder %s25, 1
      %p90 = por %p88, %p89
      %p92 = scmp.ne.s32.totalorder %s77, %s91
      %p93 = scmp.eq.s32.totalorder %s25, 0
      %p94 = por %p92, %p93
      %s96 = sadd.s32 %s95, 1
      %p99 = scmp.eq.s32.totalorder %s19, 1
      %p100 = scmp.ne.s32.totalorder %s95, %s97
      %p101 = scmp.eq.s32.totalorder %s19, 0
      %p102 = por %p100, %p101
      %p103 = scmp.ne.s32.totalorder %s95, %s97
      %p104 = scmp.eq.s32.totalorder %s24, 1
      %p105 = por %p103, %p104
      %p106 = scmp.ne.s32.totalorder %s97, %s98
      %p107 = scmp.eq.s32.totalorder %s24, 0
      %p108 = por %p106, %p107
      %p109 = scmp.ne.s32.totalorder %s97, %s98
      %p110 = scmp.eq.s32.totalorder %s25, 1
      %p111 = por %p109, %p110
      %p113 = scmp.ne.s32.totalorder %s98, %s112
      %p114 = scmp.eq.s32.totalorder %s25, 0
      %p115 = por %p113, %p114
      %s117 = sadd.s32 %s116, 1
      %p120 = scmp.eq.s32.totalorder %s19, 1
      %p121 = scmp.ne.s32.totalorder %s116, %s118
      %p122 = scmp.eq.s32.totalorder %s19, 0
      %p123 = por %p121, %p122
      %p124 = scmp.ne.s32.totalorder %s116, %s118
      %p125 = scmp.eq.s32.totalorder %s24, 1
      %p126 = por %p124, %p125
      %p127 = scmp.ne.s32.totalorder %s118, %s119
      %p128 = scmp.eq.s32.totalorder %s24, 0
      %p129 = por %p127, %p128
      %p130 = scmp.ne.s32.totalorder %s118, %s119
      %p131 = scmp.eq.s32.totalorder %s25, 1
      %p132 = por %p130, %p131
      %p134 = scmp.ne.s32.totalorder %s119, %s133
      %p135 = scmp.eq.s32.totalorder %s25, 0
      %p136 = por %p134, %p135
      %s137 = ssub.s32 %s19, %s26
      %p138 = scmp.eq.s32.totalorder %s137, 0
      %s140 = sadd.s32 %s139, 1
      %s141 = scalar_select %p138, %s139, %s140
      %p144 = pneg %p138
      %p145 = scmp.eq.s32.totalorder %s19, 1
      %p146 = por %p144, %p145
      %p147 = scmp.ne.s32.totalorder %s139, %s142
      %p148 = scmp.eq.s32.totalorder %s19, 0
      %p149 = por %p147, %p148
      %p150 = scmp.ne.s32.totalorder %s139, %s142
      %p151 = scmp.eq.s32.totalorder %s24, 1
      %p152 = por %p150, %p151
      %p153 = scmp.ne.s32.totalorder %s142, %s143
      %p154 = scmp.eq.s32.totalorder %s24, 0
      %p155 = por %p153, %p154
      %p156 = scmp.ne.s32.totalorder %s142, %s143
      %p157 = scmp.eq.s32.totalorder %s25, 1
      %p158 = por %p156, %p157
      %p160 = scmp.ne.s32.totalorder %s143, %s159
      %p161 = scmp.eq.s32.totalorder %s25, 0
      %p162 = por %p160, %p161
      %p163 = scmp.le.s32.totalorder 1, %s19
      %p164 = scmp.lt.s32.totalorder %s19, 3
      %p165 = pnand %p163, %p164
      %p166 = pneg %p165
      // Predicated region
      $region9: #{tpu_custom_call.1} parent=5 // pred_check
        _
      $region10: #{tpu_custom_call.1} parent=5 // pred_check_branch
        %168 = sbr.rel (%p165) target = $region12
      $region11: #{tpu_custom_call.1} parent=5 // pred_region
        %s169 = ssub.s32 %s19, 1
        // Predicated region
        $region13: #{tpu_custom_call.1} parent=11 // pred_check
          %p170 = pneg %p66
        $region14: #{tpu_custom_call.1} parent=11 // pred_check_branch
          %172 = sbr.rel (%p170) target = $region16
        $region15: #{tpu_custom_call.1} parent=11 // pred_region
          %s174 = ssub.s32 50176, 50176
          %175 = vsyncadd [#allocation6], %s174
          %s176 = sshll.u32 [#allocation5], 4
          %s177 = int_to_ptr.vmem [resolvable:$true] %s176
          %182 = dma.hbm_to_vmem [thread:$0]  %s1, 50176, %s177, [#allocation6], 512, 512, 32
        $region16: #{tpu_custom_call.1} parent=11 // pred_fallthru
          _
        // Predicated region
        $region17: #{tpu_custom_call.1} parent=11 // pred_check
          %p183 = pneg %p87
        $region18: #{tpu_custom_call.1} parent=11 // pred_check_branch
          %185 = sbr.rel (%p183) target = $region20
        $region19: #{tpu_custom_call.1} parent=11 // pred_region
          %s187 = ssub.s32 64, 64
          %188 = vsyncadd [#allocation6], %s187
          %s190 = sshll.u32 [#allocation7], 4
          %s191 = int_to_ptr.vmem [resolvable:$true] %s190
          %193 = dma.hbm_to_vmem [thread:$0]  %s2, 64, %s191, [#allocation6]
        $region20: #{tpu_custom_call.1} parent=11 // pred_fallthru
          _
        // Predicated region
        $region21: #{tpu_custom_call.1} parent=11 // pred_check
          %p194 = pneg %p108
        $region22: #{tpu_custom_call.1} parent=11 // pred_check_branch
          %196 = sbr.rel (%p194) target = $region24
        $region23: #{tpu_custom_call.1} parent=11 // pred_region
          %s198 = ssub.s32 8064, 8064
          %199 = vsyncadd [#allocation9], %s198
          %s200 = sshll.u32 [#allocation8], 4
          %s201 = int_to_ptr.vmem [resolvable:$true] %s200
          %206 = dma.hbm_to_vmem [thread:$0]  %s3, 8064, %s201, [#allocation9], 128, 128, 8
        $region24: #{tpu_custom_call.1} parent=11 // pred_fallthru
          _
        // Predicated region
        $region25: #{tpu_custom_call.1} parent=11 // pred_check
          %p207 = pneg %p129
        $region26: #{tpu_custom_call.1} parent=11 // pred_check_branch
          %209 = sbr.rel (%p207) target = $region28
        $region27: #{tpu_custom_call.1} parent=11 // pred_region
          %s211 = ssub.s32 16, 16
          %212 = vsyncadd [#allocation9], %s211
          %s214 = sshll.u32 [#allocation10], 4
          %s215 = int_to_ptr.vmem [resolvable:$true] %s214
          %217 = dma.hbm_to_vmem [thread:$0]  %s4, 16, %s215, [#allocation9]
        $region28: #{tpu_custom_call.1} parent=11 // pred_fallthru
          _
      $region12: #{tpu_custom_call.1} parent=5 // pred_fallthru
        _
      %p218 = scmp.lt.s32.totalorder %s19, 2
      // Predicated region
      $region29: #{tpu_custom_call.1} parent=5 // pred_check
        %p219 = pneg %p218
      $region30: #{tpu_custom_call.1} parent=5 // pred_check_branch
        %221 = sbr.rel (%p219) target = $region32
      $region31: #{tpu_custom_call.1} parent=5 // pred_region
        // Predicated region
        $region33: #{tpu_custom_call.1} parent=31 // pred_check
          %p222 = pneg %p39
        $region34: #{tpu_custom_call.1} parent=31 // pred_check_branch
          %224 = sbr.rel (%p222) target = $region36
        $region35: #{tpu_custom_call.1} parent=31 // pred_region
          %s225 = sand.u32 %s29, 1
          %s226 = scalar_lea.sflag [#allocation3], %s225
          %s227 = sand.u32 %s29, 1
          %s228 = smul.addr %s227, 56
          %s229 = scalar_lea.vmem [#allocation2], %s228
          %s231 = ssub.s32 896, 896
          %232 = vsyncadd %s226, %s231
          %s233 = smul.addr %s19, 7
          %s234 = smul.addr %s233, 128
          %s235 = scalar_lea.hbm %s0, %s234
          %s237 = sshll.u32 %s229, 4
          %s238 = int_to_ptr.vmem [resolvable:$true] %s237
          %240 = dma.hbm_to_vmem [thread:$0]  %s235, 896, %s238, %s226
        $region36: #{tpu_custom_call.1} parent=31 // pred_fallthru
          _
      $region32: #{tpu_custom_call.1} parent=5 // pred_fallthru
        _
      %p241 = scmp.le.s32.totalorder 1, %s19
      %p242 = scmp.lt.s32.totalorder %s19, 3
      %p243 = pnand %p241, %p242
      %p244 = pneg %p243
      // Predicated region
      $region37: #{tpu_custom_call.1} parent=5 // pred_check
        _
      $region38: #{tpu_custom_call.1} parent=5 // pred_check_branch
        %246 = sbr.rel (%p243) target = $region40
      $region39: #{tpu_custom_call.1} parent=5 // pred_region
        %s247 = ssub.s32 %s19, 1
        %s248 = sand.u32 %s32, 1
        %s249 = scalar_lea.sflag [#allocation3], %s248
        %s250 = sand.u32 %s32, 1
        %s251 = smul.addr %s250, 56
        %s252 = scalar_lea.vmem [#allocation2], %s251
        // Predicated region
        $region41: #{tpu_custom_call.1} parent=39 // pred_check
          %p253 = pneg %p45
        $region42: #{tpu_custom_call.1} parent=39 // pred_check_branch
          %255 = sbr.rel (%p253) target = $region44
        $region43: #{tpu_custom_call.1} parent=39 // pred_region
          %256 = dma.done %s249, 896
        $region44: #{tpu_custom_call.1} parent=39 // pred_fallthru
          _
        // Predicated region
        $region45: #{tpu_custom_call.1} parent=39 // pred_check
          %p257 = pneg %p66
        $region46: #{tpu_custom_call.1} parent=39 // pred_check_branch
          %259 = sbr.rel (%p257) target = $region48
        $region47: #{tpu_custom_call.1} parent=39 // pred_region
          %260 = dma.done [#allocation6], 50176
        $region48: #{tpu_custom_call.1} parent=39 // pred_fallthru
          _
        // Predicated region
        $region49: #{tpu_custom_call.1} parent=39 // pred_check
          %p261 = pneg %p87
        $region50: #{tpu_custom_call.1} parent=39 // pred_check_branch
          %263 = sbr.rel (%p261) target = $region52
        $region51: #{tpu_custom_call.1} parent=39 // pred_region
          %264 = dma.done [#allocation6], 64
        $region52: #{tpu_custom_call.1} parent=39 // pred_fallthru
          _
        // Predicated region
        $region53: #{tpu_custom_call.1} parent=39 // pred_check
          %p265 = pneg %p108
        $region54: #{tpu_custom_call.1} parent=39 // pred_check_branch
          %267 = sbr.rel (%p265) target = $region56
        $region55: #{tpu_custom_call.1} parent=39 // pred_region
          %268 = dma.done [#allocation9], 8064
        $region56: #{tpu_custom_call.1} parent=39 // pred_fallthru
          _
        // Predicated region
        $region57: #{tpu_custom_call.1} parent=39 // pred_check
          %p269 = pneg %p129
        $region58: #{tpu_custom_call.1} parent=39 // pred_check_branch
          %271 = sbr.rel (%p269) target = $region60
        $region59: #{tpu_custom_call.1} parent=39 // pred_region
          %272 = dma.done [#allocation9], 16
        $region60: #{tpu_custom_call.1} parent=39 // pred_fallthru
          _
        %s273 = sand.u32 %s32, 1
        %s274 = scalar_lea.sflag [#allocation3], %s273
        %s275 = sand.u32 %s32, 1
        %s276 = smul.addr %s275, 56
        %s277 = scalar_lea.vmem [#allocation2], %s276
        %p278 = pneg %p45
        %p279 = pneg %p42
        %p280 = pneg %p66
        %p281 = pneg %p63
        %p282 = pneg %p87
        %p283 = pneg %p84
        %p284 = pneg %p108
        %p285 = pneg %p105
        %p286 = pneg %p129
        %p287 = pneg %p126
        %p288 = pneg %p155
        %p289 = pneg %p152
        %s290 = sand.u32 %s142, 1
        %s291 = scalar_lea.sflag [#allocation4], %s290
        %s292 = sand.u32 %s142, 1
        %s293 = smul.addr %s292, 8
        %s294 = scalar_lea.vmem [#allocation11], %s293
        %v295 = vld [vmem:[%s252] sm:$0xff]
        %v296 = vld [vmem:[%s252 + $0x8] sm:$0xff]
        %v297 = vld [vmem:[%s252 + $0x10] sm:$0xff]
        %v298 = vld [vmem:[%s252 + $0x18] sm:$0xff]
        %v299 = vld [vmem:[%s252 + $0x20] sm:$0xff]
        %v300 = vld [vmem:[%s252 + $0x28] sm:$0xff]
        %v301 = vld [vmem:[%s252 + $0x30] sm:$0xff]
        %v302 = vld [vmem:[#allocation5] sm:$0xff]
        %v303 = vld [vmem:[#allocation5 + $0x8] sm:$0xff]
        %v304 = vld [vmem:[#allocation5 + $0x10] sm:$0xff]
        %v305 = vld [vmem:[#allocation5 + $0x18] sm:$0xff]
        %v306 = vld [vmem:[#allocation5 + $0x20] sm:$0xff]
        %v307 = vld [vmem:[#allocation5 + $0x28] sm:$0xff]
        %v308 = vld [vmem:[#allocation5 + $0x30] sm:$0xff]
        %v309 = vld [vmem:[#allocation5 + $0x38] sm:$0xff]
        %v310 = vld [vmem:[#allocation5 + $0x40] sm:$0xff]
        %v311 = vld [vmem:[#allocation5 + $0x48] sm:$0xff]
        %v312 = vld [vmem:[#allocation5 + $0x50] sm:$0xff]
        %v313 = vld [vmem:[#allocation5 + $0x58] sm:$0xff]
        %v314 = vld [vmem:[#allocation5 + $0x60] sm:$0xff]
        %v315 = vld [vmem:[#allocation5 + $0x68] sm:$0xff]
        %v316 = vld [vmem:[#allocation5 + $0x70] sm:$0xff]
        %v317 = vld [vmem:[#allocation5 + $0x78] sm:$0xff]
        %v318 = vld [vmem:[#allocation5 + $0x80] sm:$0xff]
        %v319 = vld [vmem:[#allocation5 + $0x88] sm:$0xff]
        %v320 = vld [vmem:[#allocation5 + $0x90] sm:$0xff]
        %v321 = vld [vmem:[#allocation5 + $0x98] sm:$0xff]
        %v322 = vld [vmem:[#allocation5 + $0xa0] sm:$0xff]
        %v323 = vld [vmem:[#allocation5 + $0xa8] sm:$0xff]
        %v324 = vld [vmem:[#allocation5 + $0xb0] sm:$0xff]
        %v325 = vld [vmem:[#allocation5 + $0xb8] sm:$0xff]
        %v326 = vld [vmem:[#allocation5 + $0xc0] sm:$0xff]
        %v327 = vld [vmem:[#allocation5 + $0xc8] sm:$0xff]
        %v328 = vld [vmem:[#allocation5 + $0xd0] sm:$0xff]
        %v329 = vld [vmem:[#allocation5 + $0xd8] sm:$0xff]
        %v330 = vld [vmem:[#allocation5 + $0xe0] sm:$0xff]
        %v331 = vld [vmem:[#allocation5 + $0xe8] sm:$0xff]
        %v332 = vld [vmem:[#allocation5 + $0xf0] sm:$0xff]
        %v333 = vld [vmem:[#allocation5 + $0xf8] sm:$0xff]
        %v334 = vld [vmem:[#allocation5 + $0x100] sm:$0xff]
        %v335 = vld [vmem:[#allocation5 + $0x108] sm:$0xff]
        %v336 = vld [vmem:[#allocation5 + $0x110] sm:$0xff]
        %v337 = vld [vmem:[#allocation5 + $0x118] sm:$0xff]
        %v338 = vld [vmem:[#allocation5 + $0x120] sm:$0xff]
        %v339 = vld [vmem:[#allocation5 + $0x128] sm:$0xff]
        %v340 = vld [vmem:[#allocation5 + $0x130] sm:$0xff]
        %v341 = vld [vmem:[#allocation5 + $0x138] sm:$0xff]
        %v342 = vld [vmem:[#allocation5 + $0x140] sm:$0xff]
        %v343 = vld [vmem:[#allocation5 + $0x148] sm:$0xff]
        %v344 = vld [vmem:[#allocation5 + $0x150] sm:$0xff]
        %v345 = vld [vmem:[#allocation5 + $0x158] sm:$0xff]
        %v346 = vld [vmem:[#allocation5 + $0x160] sm:$0xff]
        %v347 = vld [vmem:[#allocation5 + $0x168] sm:$0xff]
        %v348 = vld [vmem:[#allocation5 + $0x170] sm:$0xff]
        %v349 = vld [vmem:[#allocation5 + $0x178] sm:$0xff]
        %v350 = vld [vmem:[#allocation5 + $0x180] sm:$0xff]
        %v351 = vld [vmem:[#allocation5 + $0x188] sm:$0xff]
        %v352 = vld [vmem:[#allocation5 + $0x190] sm:$0xff]
        %v353 = vld [vmem:[#allocation5 + $0x198] sm:$0xff]
        %v354 = vld [vmem:[#allocation5 + $0x1a0] sm:$0xff]
        %v355 = vld [vmem:[#allocation5 + $0x1a8] sm:$0xff]
        %v356 = vld [vmem:[#allocation5 + $0x1b0] sm:$0xff]
        %v357 = vld [vmem:[#allocation5 + $0x1b8] sm:$0xff]
        %v358 = vld [vmem:[#allocation5 + $0x1c0] sm:$0xff]
        %v359 = vld [vmem:[#allocation5 + $0x1c8] sm:$0xff]
        %v360 = vld [vmem:[#allocation5 + $0x1d0] sm:$0xff]
        %v361 = vld [vmem:[#allocation5 + $0x1d8] sm:$0xff]
        %v362 = vld [vmem:[#allocation5 + $0x1e0] sm:$0xff]
        %v363 = vld [vmem:[#allocation5 + $0x1e8] sm:$0xff]
        %v364 = vld [vmem:[#allocation5 + $0x1f0] sm:$0xff]
        %v365 = vld [vmem:[#allocation5 + $0x1f8] sm:$0xff]
        %v366 = vld [vmem:[#allocation5 + $0x200] sm:$0xff]
        %v367 = vld [vmem:[#allocation5 + $0x208] sm:$0xff]
        %v368 = vld [vmem:[#allocation5 + $0x210] sm:$0xff]
        %v369 = vld [vmem:[#allocation5 + $0x218] sm:$0xff]
        %v370 = vld [vmem:[#allocation5 + $0x220] sm:$0xff]
        %v371 = vld [vmem:[#allocation5 + $0x228] sm:$0xff]
        %v372 = vld [vmem:[#allocation5 + $0x230] sm:$0xff]
        %v373 = vld [vmem:[#allocation5 + $0x238] sm:$0xff]
        %v374 = vld [vmem:[#allocation5 + $0x240] sm:$0xff]
        %v375 = vld [vmem:[#allocation5 + $0x248] sm:$0xff]
        %v376 = vld [vmem:[#allocation5 + $0x250] sm:$0xff]
        %v377 = vld [vmem:[#allocation5 + $0x258] sm:$0xff]
        %v378 = vld [vmem:[#allocation5 + $0x260] sm:$0xff]
        %v379 = vld [vmem:[#allocation5 + $0x268] sm:$0xff]
        %v380 = vld [vmem:[#allocation5 + $0x270] sm:$0xff]
        %v381 = vld [vmem:[#allocation5 + $0x278] sm:$0xff]
        %v382 = vld [vmem:[#allocation5 + $0x280] sm:$0xff]
        %v383 = vld [vmem:[#allocation5 + $0x288] sm:$0xff]
        %v384 = vld [vmem:[#allocation5 + $0x290] sm:$0xff]
        %v385 = vld [vmem:[#allocation5 + $0x298] sm:$0xff]
        %v386 = vld [vmem:[#allocation5 + $0x2a0] sm:$0xff]
        %v387 = vld [vmem:[#allocation5 + $0x2a8] sm:$0xff]
        %v388 = vld [vmem:[#allocation5 + $0x2b0] sm:$0xff]
        %v389 = vld [vmem:[#allocation5 + $0x2b8] sm:$0xff]
        %v390 = vld [vmem:[#allocation5 + $0x2c0] sm:$0xff]
        %v391 = vld [vmem:[#allocation5 + $0x2c8] sm:$0xff]
        %v392 = vld [vmem:[#allocation5 + $0x2d0] sm:$0xff]
        %v393 = vld [vmem:[#allocation5 + $0x2d8] sm:$0xff]
        %v394 = vld [vmem:[#allocation5 + $0x2e0] sm:$0xff]
        %v395 = vld [vmem:[#allocation5 + $0x2e8] sm:$0xff]
        %v396 = vld [vmem:[#allocation5 + $0x2f0] sm:$0xff]
        %v397 = vld [vmem:[#allocation5 + $0x2f8] sm:$0xff]
        %v398 = vld [vmem:[#allocation5 + $0x300] sm:$0xff]
        %v399 = vld [vmem:[#allocation5 + $0x308] sm:$0xff]
        %v400 = vld [vmem:[#allocation5 + $0x310] sm:$0xff]
        %v401 = vld [vmem:[#allocation5 + $0x318] sm:$0xff]
        %v402 = vld [vmem:[#allocation5 + $0x320] sm:$0xff]
        %v403 = vld [vmem:[#allocation5 + $0x328] sm:$0xff]
        %v404 = vld [vmem:[#allocation5 + $0x330] sm:$0xff]
        %v405 = vld [vmem:[#allocation5 + $0x338] sm:$0xff]
        %v406 = vld [vmem:[#allocation5 + $0x340] sm:$0xff]
        %v407 = vld [vmem:[#allocation5 + $0x348] sm:$0xff]
        %v408 = vld [vmem:[#allocation5 + $0x350] sm:$0xff]
        %v409 = vld [vmem:[#allocation5 + $0x358] sm:$0xff]
        %v410 = vld [vmem:[#allocation5 + $0x360] sm:$0xff]
        %v411 = vld [vmem:[#allocation5 + $0x368] sm:$0xff]
        %v412 = vld [vmem:[#allocation5 + $0x370] sm:$0xff]
        %v413 = vld [vmem:[#allocation5 + $0x378] sm:$0xff]
        %v414 = vld [vmem:[#allocation5 + $0x380] sm:$0xff]
        %v415 = vld [vmem:[#allocation5 + $0x388] sm:$0xff]
        %v416 = vld [vmem:[#allocation5 + $0x390] sm:$0xff]
        %v417 = vld [vmem:[#allocation5 + $0x398] sm:$0xff]
        %v418 = vld [vmem:[#allocation5 + $0x3a0] sm:$0xff]
        %v419 = vld [vmem:[#allocation5 + $0x3a8] sm:$0xff]
        %v420 = vld [vmem:[#allocation5 + $0x3b0] sm:$0xff]
        %v421 = vld [vmem:[#allocation5 + $0x3b8] sm:$0xff]
        %v422 = vld [vmem:[#allocation5 + $0x3c0] sm:$0xff]
        %v423 = vld [vmem:[#allocation5 + $0x3c8] sm:$0xff]
        %v424 = vld [vmem:[#allocation5 + $0x3d0] sm:$0xff]
        %v425 = vld [vmem:[#allocation5 + $0x3d8] sm:$0xff]
        %v426 = vld [vmem:[#allocation5 + $0x3e0] sm:$0xff]
        %v427 = vld [vmem:[#allocation5 + $0x3e8] sm:$0xff]
        %v428 = vld [vmem:[#allocation5 + $0x3f0] sm:$0xff]
        %v429 = vld [vmem:[#allocation5 + $0x3f8] sm:$0xff]
        %v430 = vld [vmem:[#allocation5 + $0x400] sm:$0xff]
        %v431 = vld [vmem:[#allocation5 + $0x408] sm:$0xff]
        %v432 = vld [vmem:[#allocation5 + $0x410] sm:$0xff]
        %v433 = vld [vmem:[#allocation5 + $0x418] sm:$0xff]
        %v434 = vld [vmem:[#allocation5 + $0x420] sm:$0xff]
        %v435 = vld [vmem:[#allocation5 + $0x428] sm:$0xff]
        %v436 = vld [vmem:[#allocation5 + $0x430] sm:$0xff]
        %v437 = vld [vmem:[#allocation5 + $0x438] sm:$0xff]
        %v438 = vld [vmem:[#allocation5 + $0x440] sm:$0xff]
        %v439 = vld [vmem:[#allocation5 + $0x448] sm:$0xff]
        %v440 = vld [vmem:[#allocation5 + $0x450] sm:$0xff]
        %v441 = vld [vmem:[#allocation5 + $0x458] sm:$0xff]
        %v442 = vld [vmem:[#allocation5 + $0x460] sm:$0xff]
        %v443 = vld [vmem:[#allocation5 + $0x468] sm:$0xff]
        %v444 = vld [vmem:[#allocation5 + $0x470] sm:$0xff]
        %v445 = vld [vmem:[#allocation5 + $0x478] sm:$0xff]
        %v446 = vld [vmem:[#allocation5 + $0x480] sm:$0xff]
        %v447 = vld [vmem:[#allocation5 + $0x488] sm:$0xff]
        %v448 = vld [vmem:[#allocation5 + $0x490] sm:$0xff]
        %v449 = vld [vmem:[#allocation5 + $0x498] sm:$0xff]
        %v450 = vld [vmem:[#allocation5 + $0x4a0] sm:$0xff]
        %v451 = vld [vmem:[#allocation5 + $0x4a8] sm:$0xff]
        %v452 = vld [vmem:[#allocation5 + $0x4b0] sm:$0xff]
        %v453 = vld [vmem:[#allocation5 + $0x4b8] sm:$0xff]
        %v454 = vld [vmem:[#allocation5 + $0x4c0] sm:$0xff]
        %v455 = vld [vmem:[#allocation5 + $0x4c8] sm:$0xff]
        %v456 = vld [vmem:[#allocation5 + $0x4d0] sm:$0xff]
        %v457 = vld [vmem:[#allocation5 + $0x4d8] sm:$0xff]
        %v458 = vld [vmem:[#allocation5 + $0x4e0] sm:$0xff]
        %v459 = vld [vmem:[#allocation5 + $0x4e8] sm:$0xff]
        %v460 = vld [vmem:[#allocation5 + $0x4f0] sm:$0xff]
        %v461 = vld [vmem:[#allocation5 + $0x4f8] sm:$0xff]
        %v462 = vld [vmem:[#allocation5 + $0x500] sm:$0xff]
        %v463 = vld [vmem:[#allocation5 + $0x508] sm:$0xff]
        %v464 = vld [vmem:[#allocation5 + $0x510] sm:$0xff]
        %v465 = vld [vmem:[#allocation5 + $0x518] sm:$0xff]
        %v466 = vld [vmem:[#allocation5 + $0x520] sm:$0xff]
        %v467 = vld [vmem:[#allocation5 + $0x528] sm:$0xff]
        %v468 = vld [vmem:[#allocation5 + $0x530] sm:$0xff]
        %v469 = vld [vmem:[#allocation5 + $0x538] sm:$0xff]
        %v470 = vld [vmem:[#allocation5 + $0x540] sm:$0xff]
        %v471 = vld [vmem:[#allocation5 + $0x548] sm:$0xff]
        %v472 = vld [vmem:[#allocation5 + $0x550] sm:$0xff]
        %v473 = vld [vmem:[#allocation5 + $0x558] sm:$0xff]
        %v474 = vld [vmem:[#allocation5 + $0x560] sm:$0xff]
        %v475 = vld [vmem:[#allocation5 + $0x568] sm:$0xff]
        %v476 = vld [vmem:[#allocation5 + $0x570] sm:$0xff]
        %v477 = vld [vmem:[#allocation5 + $0x578] sm:$0xff]
        %v478 = vld [vmem:[#allocation5 + $0x580] sm:$0xff]
        %v479 = vld [vmem:[#allocation5 + $0x588] sm:$0xff]
        %v480 = vld [vmem:[#allocation5 + $0x590] sm:$0xff]
        %v481 = vld [vmem:[#allocation5 + $0x598] sm:$0xff]
        %v482 = vld [vmem:[#allocation5 + $0x5a0] sm:$0xff]
        %v483 = vld [vmem:[#allocation5 + $0x5a8] sm:$0xff]
        %v484 = vld [vmem:[#allocation5 + $0x5b0] sm:$0xff]
        %v485 = vld [vmem:[#allocation5 + $0x5b8] sm:$0xff]
        %v486 = vld [vmem:[#allocation5 + $0x5c0] sm:$0xff]
        %v487 = vld [vmem:[#allocation5 + $0x5c8] sm:$0xff]
        %v488 = vld [vmem:[#allocation5 + $0x5d0] sm:$0xff]
        %v489 = vld [vmem:[#allocation5 + $0x5d8] sm:$0xff]
        %v490 = vld [vmem:[#allocation5 + $0x5e0] sm:$0xff]
        %v491 = vld [vmem:[#allocation5 + $0x5e8] sm:$0xff]
        %v492 = vld [vmem:[#allocation5 + $0x5f0] sm:$0xff]
        %v493 = vld [vmem:[#allocation5 + $0x5f8] sm:$0xff]
        %v494 = vld [vmem:[#allocation5 + $0x600] sm:$0xff]
        %v495 = vld [vmem:[#allocation5 + $0x608] sm:$0xff]
        %v496 = vld [vmem:[#allocation5 + $0x610] sm:$0xff]
        %v497 = vld [vmem:[#allocation5 + $0x618] sm:$0xff]
        %v498 = vld [vmem:[#allocation5 + $0x620] sm:$0xff]
        %v499 = vld [vmem:[#allocation5 + $0x628] sm:$0xff]
        %v500 = vld [vmem:[#allocation5 + $0x630] sm:$0xff]
        %v501 = vld [vmem:[#allocation5 + $0x638] sm:$0xff]
        %v502 = vld [vmem:[#allocation5 + $0x640] sm:$0xff]
        %v503 = vld [vmem:[#allocation5 + $0x648] sm:$0xff]
        %v504 = vld [vmem:[#allocation5 + $0x650] sm:$0xff]
        %v505 = vld [vmem:[#allocation5 + $0x658] sm:$0xff]
        %v506 = vld [vmem:[#allocation5 + $0x660] sm:$0xff]
        %v507 = vld [vmem:[#allocation5 + $0x668] sm:$0xff]
        %v508 = vld [vmem:[#allocation5 + $0x670] sm:$0xff]
        %v509 = vld [vmem:[#allocation5 + $0x678] sm:$0xff]
        %v510 = vld [vmem:[#allocation5 + $0x680] sm:$0xff]
        %v511 = vld [vmem:[#allocation5 + $0x688] sm:$0xff]
        %v512 = vld [vmem:[#allocation5 + $0x690] sm:$0xff]
        %v513 = vld [vmem:[#allocation5 + $0x698] sm:$0xff]
        %v514 = vld [vmem:[#allocation5 + $0x6a0] sm:$0xff]
        %v515 = vld [vmem:[#allocation5 + $0x6a8] sm:$0xff]
        %v516 = vld [vmem:[#allocation5 + $0x6b0] sm:$0xff]
        %v517 = vld [vmem:[#allocation5 + $0x6b8] sm:$0xff]
        %v518 = vld [vmem:[#allocation5 + $0x6c0] sm:$0xff]
        %v519 = vld [vmem:[#allocation5 + $0x6c8] sm:$0xff]
        %v520 = vld [vmem:[#allocation5 + $0x6d0] sm:$0xff]
        %v521 = vld [vmem:[#allocation5 + $0x6d8] sm:$0xff]
        %v522 = vld [vmem:[#allocation5 + $0x6e0] sm:$0xff]
        %v523 = vld [vmem:[#allocation5 + $0x6e8] sm:$0xff]
        %v524 = vld [vmem:[#allocation5 + $0x6f0] sm:$0xff]
        %v525 = vld [vmem:[#allocation5 + $0x6f8] sm:$0xff]
        %v526 = vld [vmem:[#allocation5 + $0x700] sm:$0xff]
        %v527 = vld [vmem:[#allocation5 + $0x708] sm:$0xff]
        %v528 = vld [vmem:[#allocation5 + $0x710] sm:$0xff]
        %v529 = vld [vmem:[#allocation5 + $0x718] sm:$0xff]
        %v530 = vld [vmem:[#allocation5 + $0x720] sm:$0xff]
        %v531 = vld [vmem:[#allocation5 + $0x728] sm:$0xff]
        %v532 = vld [vmem:[#allocation5 + $0x730] sm:$0xff]
        %v533 = vld [vmem:[#allocation5 + $0x738] sm:$0xff]
        %v534 = vld [vmem:[#allocation5 + $0x740] sm:$0xff]
        %v535 = vld [vmem:[#allocation5 + $0x748] sm:$0xff]
        %v536 = vld [vmem:[#allocation5 + $0x750] sm:$0xff]
        %v537 = vld [vmem:[#allocation5 + $0x758] sm:$0xff]
        %v538 = vld [vmem:[#allocation5 + $0x760] sm:$0xff]
        %v539 = vld [vmem:[#allocation5 + $0x768] sm:$0xff]
        %v540 = vld [vmem:[#allocation5 + $0x770] sm:$0xff]
        %v541 = vld [vmem:[#allocation5 + $0x778] sm:$0xff]
        %v542 = vld [vmem:[#allocation5 + $0x780] sm:$0xff]
        %v543 = vld [vmem:[#allocation5 + $0x788] sm:$0xff]
        %v544 = vld [vmem:[#allocation5 + $0x790] sm:$0xff]
        %v545 = vld [vmem:[#allocation5 + $0x798] sm:$0xff]
        %v546 = vld [vmem:[#allocation5 + $0x7a0] sm:$0xff]
        %v547 = vld [vmem:[#allocation5 + $0x7a8] sm:$0xff]
        %v548 = vld [vmem:[#allocation5 + $0x7b0] sm:$0xff]
        %v549 = vld [vmem:[#allocation5 + $0x7b8] sm:$0xff]
        %v550 = vld [vmem:[#allocation5 + $0x7c0] sm:$0xff]
        %v551 = vld [vmem:[#allocation5 + $0x7c8] sm:$0xff]
        %v552 = vld [vmem:[#allocation5 + $0x7d0] sm:$0xff]
        %v553 = vld [vmem:[#allocation5 + $0x7d8] sm:$0xff]
        %v554 = vld [vmem:[#allocation5 + $0x7e0] sm:$0xff]
        %v555 = vld [vmem:[#allocation5 + $0x7e8] sm:$0xff]
        %v556 = vld [vmem:[#allocation5 + $0x7f0] sm:$0xff]
        %v557 = vld [vmem:[#allocation5 + $0x7f8] sm:$0xff]
        %v558 = vld [vmem:[#allocation5 + $0x800] sm:$0xff]
        %v559 = vld [vmem:[#allocation5 + $0x808] sm:$0xff]
        %v560 = vld [vmem:[#allocation5 + $0x810] sm:$0xff]
        %v561 = vld [vmem:[#allocation5 + $0x818] sm:$0xff]
        %v562 = vld [vmem:[#allocation5 + $0x820] sm:$0xff]
        %v563 = vld [vmem:[#allocation5 + $0x828] sm:$0xff]
        %v564 = vld [vmem:[#allocation5 + $0x830] sm:$0xff]
        %v565 = vld [vmem:[#allocation5 + $0x838] sm:$0xff]
        %v566 = vld [vmem:[#allocation5 + $0x840] sm:$0xff]
        %v567 = vld [vmem:[#allocation5 + $0x848] sm:$0xff]
        %v568 = vld [vmem:[#allocation5 + $0x850] sm:$0xff]
        %v569 = vld [vmem:[#allocation5 + $0x858] sm:$0xff]
        %v570 = vld [vmem:[#allocation5 + $0x860] sm:$0xff]
        %v571 = vld [vmem:[#allocation5 + $0x868] sm:$0xff]
        %v572 = vld [vmem:[#allocation5 + $0x870] sm:$0xff]
        %v573 = vld [vmem:[#allocation5 + $0x878] sm:$0xff]
        %v574 = vld [vmem:[#allocation5 + $0x880] sm:$0xff]
        %v575 = vld [vmem:[#allocation5 + $0x888] sm:$0xff]
        %v576 = vld [vmem:[#allocation5 + $0x890] sm:$0xff]
        %v577 = vld [vmem:[#allocation5 + $0x898] sm:$0xff]
        %v578 = vld [vmem:[#allocation5 + $0x8a0] sm:$0xff]
        %v579 = vld [vmem:[#allocation5 + $0x8a8] sm:$0xff]
        %v580 = vld [vmem:[#allocation5 + $0x8b0] sm:$0xff]
        %v581 = vld [vmem:[#allocation5 + $0x8b8] sm:$0xff]
        %v582 = vld [vmem:[#allocation5 + $0x8c0] sm:$0xff]
        %v583 = vld [vmem:[#allocation5 + $0x8c8] sm:$0xff]
        %v584 = vld [vmem:[#allocation5 + $0x8d0] sm:$0xff]
        %v585 = vld [vmem:[#allocation5 + $0x8d8] sm:$0xff]
        %v586 = vld [vmem:[#allocation5 + $0x8e0] sm:$0xff]
        %v587 = vld [vmem:[#allocation5 + $0x8e8] sm:$0xff]
        %v588 = vld [vmem:[#allocation5 + $0x8f0] sm:$0xff]
        %v589 = vld [vmem:[#allocation5 + $0x8f8] sm:$0xff]
        %v590 = vld [vmem:[#allocation5 + $0x900] sm:$0xff]
        %v591 = vld [vmem:[#allocation5 + $0x908] sm:$0xff]
        %v592 = vld [vmem:[#allocation5 + $0x910] sm:$0xff]
        %v593 = vld [vmem:[#allocation5 + $0x918] sm:$0xff]
        %v594 = vld [vmem:[#allocation5 + $0x920] sm:$0xff]
        %v595 = vld [vmem:[#allocation5 + $0x928] sm:$0xff]
        %v596 = vld [vmem:[#allocation5 + $0x930] sm:$0xff]
        %v597 = vld [vmem:[#allocation5 + $0x938] sm:$0xff]
        %v598 = vld [vmem:[#allocation5 + $0x940] sm:$0xff]
        %v599 = vld [vmem:[#allocation5 + $0x948] sm:$0xff]
        %v600 = vld [vmem:[#allocation5 + $0x950] sm:$0xff]
        %v601 = vld [vmem:[#allocation5 + $0x958] sm:$0xff]
        %v602 = vld [vmem:[#allocation5 + $0x960] sm:$0xff]
        %v603 = vld [vmem:[#allocation5 + $0x968] sm:$0xff]
        %v604 = vld [vmem:[#allocation5 + $0x970] sm:$0xff]
        %v605 = vld [vmem:[#allocation5 + $0x978] sm:$0xff]
        %v606 = vld [vmem:[#allocation5 + $0x980] sm:$0xff]
        %v607 = vld [vmem:[#allocation5 + $0x988] sm:$0xff]
        %v608 = vld [vmem:[#allocation5 + $0x990] sm:$0xff]
        %v609 = vld [vmem:[#allocation5 + $0x998] sm:$0xff]
        %v610 = vld [vmem:[#allocation5 + $0x9a0] sm:$0xff]
        %v611 = vld [vmem:[#allocation5 + $0x9a8] sm:$0xff]
        %v612 = vld [vmem:[#allocation5 + $0x9b0] sm:$0xff]
        %v613 = vld [vmem:[#allocation5 + $0x9b8] sm:$0xff]
        %v614 = vld [vmem:[#allocation5 + $0x9c0] sm:$0xff]
        %v615 = vld [vmem:[#allocation5 + $0x9c8] sm:$0xff]
        %v616 = vld [vmem:[#allocation5 + $0x9d0] sm:$0xff]
        %v617 = vld [vmem:[#allocation5 + $0x9d8] sm:$0xff]
        %v618 = vld [vmem:[#allocation5 + $0x9e0] sm:$0xff]
        %v619 = vld [vmem:[#allocation5 + $0x9e8] sm:$0xff]
        %v620 = vld [vmem:[#allocation5 + $0x9f0] sm:$0xff]
        %v621 = vld [vmem:[#allocation5 + $0x9f8] sm:$0xff]
        %v622 = vld [vmem:[#allocation5 + $0xa00] sm:$0xff]
        %v623 = vld [vmem:[#allocation5 + $0xa08] sm:$0xff]
        %v624 = vld [vmem:[#allocation5 + $0xa10] sm:$0xff]
        %v625 = vld [vmem:[#allocation5 + $0xa18] sm:$0xff]
        %v626 = vld [vmem:[#allocation5 + $0xa20] sm:$0xff]
        %v627 = vld [vmem:[#allocation5 + $0xa28] sm:$0xff]
        %v628 = vld [vmem:[#allocation5 + $0xa30] sm:$0xff]
        %v629 = vld [vmem:[#allocation5 + $0xa38] sm:$0xff]
        %v630 = vld [vmem:[#allocation5 + $0xa40] sm:$0xff]
        %v631 = vld [vmem:[#allocation5 + $0xa48] sm:$0xff]
        %v632 = vld [vmem:[#allocation5 + $0xa50] sm:$0xff]
        %v633 = vld [vmem:[#allocation5 + $0xa58] sm:$0xff]
        %v634 = vld [vmem:[#allocation5 + $0xa60] sm:$0xff]
        %v635 = vld [vmem:[#allocation5 + $0xa68] sm:$0xff]
        %v636 = vld [vmem:[#allocation5 + $0xa70] sm:$0xff]
        %v637 = vld [vmem:[#allocation5 + $0xa78] sm:$0xff]
        %v638 = vld [vmem:[#allocation5 + $0xa80] sm:$0xff]
        %v639 = vld [vmem:[#allocation5 + $0xa88] sm:$0xff]
        %v640 = vld [vmem:[#allocation5 + $0xa90] sm:$0xff]
        %v641 = vld [vmem:[#allocation5 + $0xa98] sm:$0xff]
        %v642 = vld [vmem:[#allocation5 + $0xaa0] sm:$0xff]
        %v643 = vld [vmem:[#allocation5 + $0xaa8] sm:$0xff]
        %v644 = vld [vmem:[#allocation5 + $0xab0] sm:$0xff]
        %v645 = vld [vmem:[#allocation5 + $0xab8] sm:$0xff]
        %v646 = vld [vmem:[#allocation5 + $0xac0] sm:$0xff]
        %v647 = vld [vmem:[#allocation5 + $0xac8] sm:$0xff]
        %v648 = vld [vmem:[#allocation5 + $0xad0] sm:$0xff]
        %v649 = vld [vmem:[#allocation5 + $0xad8] sm:$0xff]
        %v650 = vld [vmem:[#allocation5 + $0xae0] sm:$0xff]
        %v651 = vld [vmem:[#allocation5 + $0xae8] sm:$0xff]
        %v652 = vld [vmem:[#allocation5 + $0xaf0] sm:$0xff]
        %v653 = vld [vmem:[#allocation5 + $0xaf8] sm:$0xff]
        %v654 = vld [vmem:[#allocation5 + $0xb00] sm:$0xff]
        %v655 = vld [vmem:[#allocation5 + $0xb08] sm:$0xff]
        %v656 = vld [vmem:[#allocation5 + $0xb10] sm:$0xff]
        %v657 = vld [vmem:[#allocation5 + $0xb18] sm:$0xff]
        %v658 = vld [vmem:[#allocation5 + $0xb20] sm:$0xff]
        %v659 = vld [vmem:[#allocation5 + $0xb28] sm:$0xff]
        %v660 = vld [vmem:[#allocation5 + $0xb30] sm:$0xff]
        %v661 = vld [vmem:[#allocation5 + $0xb38] sm:$0xff]
        %v662 = vld [vmem:[#allocation5 + $0xb40] sm:$0xff]
        %v663 = vld [vmem:[#allocation5 + $0xb48] sm:$0xff]
        %v664 = vld [vmem:[#allocation5 + $0xb50] sm:$0xff]
        %v665 = vld [vmem:[#allocation5 + $0xb58] sm:$0xff]
        %v666 = vld [vmem:[#allocation5 + $0xb60] sm:$0xff]
        %v667 = vld [vmem:[#allocation5 + $0xb68] sm:$0xff]
        %v668 = vld [vmem:[#allocation5 + $0xb70] sm:$0xff]
        %v669 = vld [vmem:[#allocation5 + $0xb78] sm:$0xff]
        %v670 = vld [vmem:[#allocation5 + $0xb80] sm:$0xff]
        %v671 = vld [vmem:[#allocation5 + $0xb88] sm:$0xff]
        %v672 = vld [vmem:[#allocation5 + $0xb90] sm:$0xff]
        %v673 = vld [vmem:[#allocation5 + $0xb98] sm:$0xff]
        %v674 = vld [vmem:[#allocation5 + $0xba0] sm:$0xff]
        %v675 = vld [vmem:[#allocation5 + $0xba8] sm:$0xff]
        %v676 = vld [vmem:[#allocation5 + $0xbb0] sm:$0xff]
        %v677 = vld [vmem:[#allocation5 + $0xbb8] sm:$0xff]
        %v678 = vld [vmem:[#allocation5 + $0xbc0] sm:$0xff]
        %v679 = vld [vmem:[#allocation5 + $0xbc8] sm:$0xff]
        %v680 = vld [vmem:[#allocation5 + $0xbd0] sm:$0xff]
        %v681 = vld [vmem:[#allocation5 + $0xbd8] sm:$0xff]
        %v682 = vld [vmem:[#allocation5 + $0xbe0] sm:$0xff]
        %v683 = vld [vmem:[#allocation5 + $0xbe8] sm:$0xff]
        %v684 = vld [vmem:[#allocation5 + $0xbf0] sm:$0xff]
        %v685 = vld [vmem:[#allocation5 + $0xbf8] sm:$0xff]
        %v686 = vld [vmem:[#allocation5 + $0xc00] sm:$0xff]
        %v687 = vld [vmem:[#allocation5 + $0xc08] sm:$0xff]
        %v688 = vld [vmem:[#allocation5 + $0xc10] sm:$0xff]
        %v689 = vld [vmem:[#allocation5 + $0xc18] sm:$0xff]
        %v690 = vld [vmem:[#allocation5 + $0xc20] sm:$0xff]
        %v691 = vld [vmem:[#allocation5 + $0xc28] sm:$0xff]
        %v692 = vld [vmem:[#allocation5 + $0xc30] sm:$0xff]
        %v693 = vld [vmem:[#allocation5 + $0xc38] sm:$0xff]
        %v694 = vld [vmem:[#allocation7] sm:$0xf]
        %v696 = vlaneseq
        %v697 = vshrl.u32 %v696, 7
        %v698 = vsub.s32 0, %v697
        %v699 = vrot.slane %v694, %v698
        %v700 = vlaneseq
        %v701 = vshrl.u32 %v700, 7
        %v702 = vsub.s32 1, %v701
        %v703 = vrot.slane %v694, %v702
        %v704 = vlaneseq
        %v705 = vshrl.u32 %v704, 7
        %v706 = vsub.s32 2, %v705
        %v707 = vrot.slane %v694, %v706
        %v708 = vlaneseq
        %v709 = vshrl.u32 %v708, 7
        %v710 = vsub.s32 3, %v709
        %v711 = vrot.slane %v694, %v710
        %vm716 = vcmask 130048
        %v718 = vsel %vm716, %v301, 0
        %720 = vmatprep.subr.mxu0 %v363
        %721 = vmatpush1.msra.mxu0 %v362
        %722 = vmatprep.subr.mxu0 %v359
        %723 = vmatpush1.msra.mxu0 %v358
        %724 = vmatprep.subr.mxu0 %v355
        %725 = vmatpush1.msra.mxu0 %v354
        %726 = vmatprep.subr.mxu0 %v351
        %727 = vmatpush1.msra.mxu0 %v350
        %728 = vmatprep.subr.mxu0 %v347
        %729 = vmatpush1.msra.mxu0 %v346
        %730 = vmatprep.subr.mxu0 %v343
        %731 = vmatpush1.msra.mxu0 %v342
        %732 = vmatprep.subr.mxu0 %v339
        %733 = vmatpush1.msra.mxu0 %v338
        %734 = vmatprep.subr.mxu0 %v335
        %735 = vmatpush1.msra.mxu0 %v334
        %736 = vmatprep.subr.mxu0 %v331
        %737 = vmatpush1.msra.mxu0 %v330
        %738 = vmatprep.subr.mxu0 %v327
        %739 = vmatpush1.msra.mxu0 %v326
        %740 = vmatprep.subr.mxu0 %v323
        %741 = vmatpush1.msra.mxu0 %v322
        %742 = vmatprep.subr.mxu0 %v319
        %743 = vmatpush1.msra.mxu0 %v318
        %744 = vmatprep.subr.mxu0 %v315
        %745 = vmatpush1.msra.mxu0 %v314
        %746 = vmatprep.subr.mxu0 %v311
        %747 = vmatpush1.msra.mxu0 %v310
        %748 = vmatprep.subr.mxu0 %v307
        %749 = vmatpush1.msra.mxu0 %v306
        %750 = vmatprep.subr.mxu0 %v303
        %751 = vmatpush1.msra.mxu0 %v302
        %752 = vmatprep.subr.mxu0 %v427
        %753 = vmatpush2.msra.mxu0 %v426
        %754 = vmatprep.subr.mxu0 %v423
        %755 = vmatpush2.msra.mxu0 %v422
        %756 = vmatprep.subr.mxu0 %v419
        %757 = vmatpush2.msra.mxu0 %v418
        %758 = vmatprep.subr.mxu0 %v415
        %759 = vmatpush2.msra.mxu0 %v414
        %760 = vmatprep.subr.mxu0 %v411
        %761 = vmatpush2.msra.mxu0 %v410
        %762 = vmatprep.subr.mxu0 %v407
        %763 = vmatpush2.msra.mxu0 %v406
        %764 = vmatprep.subr.mxu0 %v403
        %765 = vmatpush2.msra.mxu0 %v402
        %766 = vmatprep.subr.mxu0 %v399
        %767 = vmatpush2.msra.mxu0 %v398
        %768 = vmatprep.subr.mxu0 %v395
        %769 = vmatpush2.msra.mxu0 %v394
        %770 = vmatprep.subr.mxu0 %v391
        %771 = vmatpush2.msra.mxu0 %v390
        %772 = vmatprep.subr.mxu0 %v387
        %773 = vmatpush2.msra.mxu0 %v386
        %774 = vmatprep.subr.mxu0 %v383
        %775 = vmatpush2.msra.mxu0 %v382
        %776 = vmatprep.subr.mxu0 %v379
        %777 = vmatpush2.msra.mxu0 %v378
        %778 = vmatprep.subr.mxu0 %v375
        %779 = vmatpush2.msra.mxu0 %v374
        %780 = vmatprep.subr.mxu0 %v371
        %781 = vmatpush2.msra.mxu0 %v370
        %782 = vmatprep.subr.mxu0 %v367
        %783 = vmatpush2.msra.mxu0 %v366
        %784 = vmatprep.mubr.f32.mxu0 %v296
        %785 = vmatmul.mubr.f32.gmra.mxu0 %v295
        %v786 = vpop.f32.mrf.mxu0
        %v787 = vadd.f32 %v699, %v786
        %v788 = vpop.f32.mrf.mxu0
        %v789 = vadd.f32 %v703, %v788
        %790 = vdwg.mxu0
        %791 = vmatprep.subr.mxu0 %v491
        %792 = vmatpush1.msra.mxu0 %v490
        %793 = vmatprep.subr.mxu0 %v487
        %794 = vmatpush1.msra.mxu0 %v486
        %795 = vmatprep.subr.mxu0 %v483
        %796 = vmatpush1.msra.mxu0 %v482
        %797 = vmatprep.subr.mxu0 %v479
        %798 = vmatpush1.msra.mxu0 %v478
        %799 = vmatprep.subr.mxu0 %v475
        %800 = vmatpush1.msra.mxu0 %v474
        %801 = vmatprep.subr.mxu0 %v471
        %802 = vmatpush1.msra.mxu0 %v470
        %803 = vmatprep.subr.mxu0 %v467
        %804 = vmatpush1.msra.mxu0 %v466
        %805 = vmatprep.subr.mxu0 %v463
        %806 = vmatpush1.msra.mxu0 %v462
        %807 = vmatprep.subr.mxu0 %v459
        %808 = vmatpush1.msra.mxu0 %v458
        %809 = vmatprep.subr.mxu0 %v455
        %810 = vmatpush1.msra.mxu0 %v454
        %811 = vmatprep.subr.mxu0 %v451
        %812 = vmatpush1.msra.mxu0 %v450
        %813 = vmatprep.subr.mxu0 %v447
        %814 = vmatpush1.msra.mxu0 %v446
        %815 = vmatprep.subr.mxu0 %v443
        %816 = vmatpush1.msra.mxu0 %v442
        %817 = vmatprep.subr.mxu0 %v439
        %818 = vmatpush1.msra.mxu0 %v438
        %819 = vmatprep.subr.mxu0 %v435
        %820 = vmatpush1.msra.mxu0 %v434
        %821 = vmatprep.subr.mxu0 %v431
        %822 = vmatpush1.msra.mxu0 %v430
        %823 = vmatprep.subr.mxu0 %v555
        %824 = vmatpush2.msra.mxu0 %v554
        %825 = vmatprep.subr.mxu0 %v551
        %826 = vmatpush2.msra.mxu0 %v550
        %827 = vmatprep.subr.mxu0 %v547
        %828 = vmatpush2.msra.mxu0 %v546
        %829 = vmatprep.subr.mxu0 %v543
        %830 = vmatpush2.msra.mxu0 %v542
        %831 = vmatprep.subr.mxu0 %v539
        %832 = vmatpush2.msra.mxu0 %v538
        %833 = vmatprep.subr.mxu0 %v535
        %834 = vmatpush2.msra.mxu0 %v534
        %835 = vmatprep.subr.mxu0 %v531
        %836 = vmatpush2.msra.mxu0 %v530
        %837 = vmatprep.subr.mxu0 %v527
        %838 = vmatpush2.msra.mxu0 %v526
        %839 = vmatprep.subr.mxu0 %v523
        %840 = vmatpush2.msra.mxu0 %v522
        %841 = vmatprep.subr.mxu0 %v519
        %842 = vmatpush2.msra.mxu0 %v518
        %843 = vmatprep.subr.mxu0 %v515
        %844 = vmatpush2.msra.mxu0 %v514
        %845 = vmatprep.subr.mxu0 %v511
        %846 = vmatpush2.msra.mxu0 %v510
        %847 = vmatprep.subr.mxu0 %v507
        %848 = vmatpush2.msra.mxu0 %v506
        %849 = vmatprep.subr.mxu0 %v503
        %850 = vmatpush2.msra.mxu0 %v502
        %851 = vmatprep.subr.mxu0 %v499
        %852 = vmatpush2.msra.mxu0 %v498
        %853 = vmatprep.subr.mxu0 %v495
        %854 = vmatpush2.msra.mxu0 %v494
        %855 = vmatprep.mubr.f32.mxu0 %v298
        %856 = vmatmul.mubr.f32.gmra.mxu0 %v297
        %v857 = vpop.f32.mrf.mxu0
        %v858 = vadd.f32 %v787, %v857
        %v859 = vpop.f32.mrf.mxu0
        %v860 = vadd.f32 %v789, %v859
        %861 = vdwg.mxu0
        %862 = vmatprep.subr.mxu0 %v619
        %863 = vmatpush1.msra.mxu0 %v618
        %864 = vmatprep.subr.mxu0 %v615
        %865 = vmatpush1.msra.mxu0 %v614
        %866 = vmatprep.subr.mxu0 %v611
        %867 = vmatpush1.msra.mxu0 %v610
        %868 = vmatprep.subr.mxu0 %v607
        %869 = vmatpush1.msra.mxu0 %v606
        %870 = vmatprep.subr.mxu0 %v603
        %871 = vmatpush1.msra.mxu0 %v602
        %872 = vmatprep.subr.mxu0 %v599
        %873 = vmatpush1.msra.mxu0 %v598
        %874 = vmatprep.subr.mxu0 %v595
        %875 = vmatpush1.msra.mxu0 %v594
        %876 = vmatprep.subr.mxu0 %v591
        %877 = vmatpush1.msra.mxu0 %v590
        %878 = vmatprep.subr.mxu0 %v587
        %879 = vmatpush1.msra.mxu0 %v586
        %880 = vmatprep.subr.mxu0 %v583
        %881 = vmatpush1.msra.mxu0 %v582
        %882 = vmatprep.subr.mxu0 %v579
        %883 = vmatpush1.msra.mxu0 %v578
        %884 = vmatprep.subr.mxu0 %v575
        %885 = vmatpush1.msra.mxu0 %v574
        %886 = vmatprep.subr.mxu0 %v571
        %887 = vmatpush1.msra.mxu0 %v570
        %888 = vmatprep.subr.mxu0 %v567
        %889 = vmatpush1.msra.mxu0 %v566
        %890 = vmatprep.subr.mxu0 %v563
        %891 = vmatpush1.msra.mxu0 %v562
        %892 = vmatprep.subr.mxu0 %v559
        %893 = vmatpush1.msra.mxu0 %v558
        %894 = vmatprep.subr.mxu0 %v683
        %895 = vmatpush2.msra.mxu0 %v682
        %896 = vmatprep.subr.mxu0 %v679
        %897 = vmatpush2.msra.mxu0 %v678
        %898 = vmatprep.subr.mxu0 %v675
        %899 = vmatpush2.msra.mxu0 %v674
        %900 = vmatprep.subr.mxu0 %v671
        %901 = vmatpush2.msra.mxu0 %v670
        %902 = vmatprep.subr.mxu0 %v667
        %903 = vmatpush2.msra.mxu0 %v666
        %904 = vmatprep.subr.mxu0 %v663
        %905 = vmatpush2.msra.mxu0 %v662
        %906 = vmatprep.subr.mxu0 %v659
        %907 = vmatpush2.msra.mxu0 %v658
        %908 = vmatprep.subr.mxu0 %v655
        %909 = vmatpush2.msra.mxu0 %v654
        %910 = vmatprep.subr.mxu0 %v651
        %911 = vmatpush2.msra.mxu0 %v650
        %912 = vmatprep.subr.mxu0 %v647
        %913 = vmatpush2.msra.mxu0 %v646
        %914 = vmatprep.subr.mxu0 %v643
        %915 = vmatpush2.msra.mxu0 %v642
        %916 = vmatprep.subr.mxu0 %v639
        %917 = vmatpush2.msra.mxu0 %v638
        %918 = vmatprep.subr.mxu0 %v635
        %919 = vmatpush2.msra.mxu0 %v634
        %920 = vmatprep.subr.mxu0 %v631
        %921 = vmatpush2.msra.mxu0 %v630
        %922 = vmatprep.subr.mxu0 %v627
        %923 = vmatpush2.msra.mxu0 %v626
        %924 = vmatprep.subr.mxu0 %v623
        %925 = vmatpush2.msra.mxu0 %v622
        %926 = vmatprep.mubr.f32.mxu0 %v300
        %927 = vmatmul.mubr.f32.gmra.mxu0 %v299
        %v928 = vpop.f32.mrf.mxu0
        %v929 = vadd.f32 %v858, %v928
        %v930 = vpop.f32.mrf.mxu0
        %v931 = vadd.f32 %v860, %v930
        %932 = vdwg.mxu0
        %933 = vmatprep.subr.mxu0 0.0
        %934 = vmatpush1.msra.mxu0 0.0
        %935 = vmatprep.subr.mxu0 0.0
        %936 = vmatpush1.msra.mxu0 0.0
        %937 = vmatprep.subr.mxu0 0.0
        %938 = vmatpush1.msra.mxu0 0.0
        %939 = vmatprep.subr.mxu0 0.0
        %940 = vmatpush1.msra.mxu0 0.0
        %941 = vmatprep.subr.mxu0 0.0
        %942 = vmatpush1.msra.mxu0 0.0
        %943 = vmatprep.subr.mxu0 0.0
        %944 = vmatpush1.msra.mxu0 0.0
        %945 = vmatprep.subr.mxu0 0.0
        %946 = vmatpush1.msra.mxu0 0.0
        %947 = vmatprep.subr.mxu0 0.0
        %948 = vmatpush1.msra.mxu0 0.0
        %949 = vmatprep.subr.mxu0 0.0
        %950 = vmatpush1.msra.mxu0 0.0
        %951 = vmatprep.subr.mxu0 0.0
        %952 = vmatpush1.msra.mxu0 0.0
        %953 = vmatprep.subr.mxu0 0.0
        %954 = vmatpush1.msra.mxu0 0.0
        %955 = vmatprep.subr.mxu0 0.0
        %956 = vmatpush1.msra.mxu0 0.0
        %957 = vmatprep.subr.mxu0 0.0
        %958 = vmatpush1.msra.mxu0 0.0
        %959 = vmatprep.subr.mxu0 0.0
        %960 = vmatpush1.msra.mxu0 0.0
        %961 = vmatprep.subr.mxu0 %v691
        %962 = vmatpush1.msra.mxu0 %v690
        %963 = vmatprep.subr.mxu0 %v687
        %964 = vmatpush1.msra.mxu0 %v686
        %965 = vmatprep.subr.mxu0 0.0
        %966 = vmatpush2.msra.mxu0 0.0
        %967 = vmatprep.subr.mxu0 0.0
        %968 = vmatpush2.msra.mxu0 0.0
        %969 = vmatprep.subr.mxu0 0.0
        %970 = vmatpush2.msra.mxu0 0.0
        %971 = vmatprep.subr.mxu0 0.0
        %972 = vmatpush2.msra.mxu0 0.0
        %973 = vmatprep.subr.mxu0 0.0
        %974 = vmatpush2.msra.mxu0 0.0
        %975 = vmatprep.subr.mxu0 0.0
        %976 = vmatpush2.msra.mxu0 0.0
        %977 = vmatprep.subr.mxu0 0.0
        %978 = vmatpush2.msra.mxu0 0.0
        %979 = vmatprep.subr.mxu0 0.0
        %980 = vmatpush2.msra.mxu0 0.0
        %981 = vmatprep.subr.mxu0 0.0
        %982 = vmatpush2.msra.mxu0 0.0
        %983 = vmatprep.subr.mxu0 0.0
        %984 = vmatpush2.msra.mxu0 0.0
        %985 = vmatprep.subr.mxu0 0.0
        %986 = vmatpush2.msra.mxu0 0.0
        %987 = vmatprep.subr.mxu0 0.0
        %988 = vmatpush2.msra.mxu0 0.0
        %989 = vmatprep.subr.mxu0 0.0
        %990 = vmatpush2.msra.mxu0 0.0
        %991 = vmatprep.subr.mxu0 0.0
        %992 = vmatpush2.msra.mxu0 0.0
        %993 = vmatprep.subr.mxu0 0.0
        %994 = vmatpush2.msra.mxu0 0.0
        %995 = vmatprep.subr.mxu0 0.0
        %996 = vmatpush2.msra.mxu0 0.0
        %997 = vmatprep.mubr.f32.mxu0 0.0
        %998 = vmatmul.mubr.f32.gmra.mxu0 %v718
        %v999 = vpop.f32.mrf.mxu0
        %v1000 = vadd.f32 %v929, %v999
        %v1001 = vpop.f32.mrf.mxu0
        %v1002 = vadd.f32 %v931, %v1001
        %1003 = vdwg.mxu0
        %1004 = vmatprep.subr.mxu0 %v365
        %1005 = vmatpush1.msra.mxu0 %v364
        %1006 = vmatprep.subr.mxu0 %v361
        %1007 = vmatpush1.msra.mxu0 %v360
        %1008 = vmatprep.subr.mxu0 %v357
        %1009 = vmatpush1.msra.mxu0 %v356
        %1010 = vmatprep.subr.mxu0 %v353
        %1011 = vmatpush1.msra.mxu0 %v352
        %1012 = vmatprep.subr.mxu0 %v349
        %1013 = vmatpush1.msra.mxu0 %v348
        %1014 = vmatprep.subr.mxu0 %v345
        %1015 = vmatpush1.msra.mxu0 %v344
        %1016 = vmatprep.subr.mxu0 %v341
        %1017 = vmatpush1.msra.mxu0 %v340
        %1018 = vmatprep.subr.mxu0 %v337
        %1019 = vmatpush1.msra.mxu0 %v336
        %1020 = vmatprep.subr.mxu0 %v333
        %1021 = vmatpush1.msra.mxu0 %v332
        %1022 = vmatprep.subr.mxu0 %v329
        %1023 = vmatpush1.msra.mxu0 %v328
        %1024 = vmatprep.subr.mxu0 %v325
        %1025 = vmatpush1.msra.mxu0 %v324
        %1026 = vmatprep.subr.mxu0 %v321
        %1027 = vmatpush1.msra.mxu0 %v320
        %1028 = vmatprep.subr.mxu0 %v317
        %1029 = vmatpush1.msra.mxu0 %v316
        %1030 = vmatprep.subr.mxu0 %v313
        %1031 = vmatpush1.msra.mxu0 %v312
        %1032 = vmatprep.subr.mxu0 %v309
        %1033 = vmatpush1.msra.mxu0 %v308
        %1034 = vmatprep.subr.mxu0 %v305
        %1035 = vmatpush1.msra.mxu0 %v304
        %1036 = vmatprep.subr.mxu0 %v429
        %1037 = vmatpush2.msra.mxu0 %v428
        %1038 = vmatprep.subr.mxu0 %v425
        %1039 = vmatpush2.msra.mxu0 %v424
        %1040 = vmatprep.subr.mxu0 %v421
        %1041 = vmatpush2.msra.mxu0 %v420
        %1042 = vmatprep.subr.mxu0 %v417
        %1043 = vmatpush2.msra.mxu0 %v416
        %1044 = vmatprep.subr.mxu0 %v413
        %1045 = vmatpush2.msra.mxu0 %v412
        %1046 = vmatprep.subr.mxu0 %v409
        %1047 = vmatpush2.msra.mxu0 %v408
        %1048 = vmatprep.subr.mxu0 %v405
        %1049 = vmatpush2.msra.mxu0 %v404
        %1050 = vmatprep.subr.mxu0 %v401
        %1051 = vmatpush2.msra.mxu0 %v400
        %1052 = vmatprep.subr.mxu0 %v397
        %1053 = vmatpush2.msra.mxu0 %v396
        %1054 = vmatprep.subr.mxu0 %v393
        %1055 = vmatpush2.msra.mxu0 %v392
        %1056 = vmatprep.subr.mxu0 %v389
        %1057 = vmatpush2.msra.mxu0 %v388
        %1058 = vmatprep.subr.mxu0 %v385
        %1059 = vmatpush2.msra.mxu0 %v384
        %1060 = vmatprep.subr.mxu0 %v381
        %1061 = vmatpush2.msra.mxu0 %v380
        %1062 = vmatprep.subr.mxu0 %v377
        %1063 = vmatpush2.msra.mxu0 %v376
        %1064 = vmatprep.subr.mxu0 %v373
        %1065 = vmatpush2.msra.mxu0 %v372
        %1066 = vmatprep.subr.mxu0 %v369
        %1067 = vmatpush2.msra.mxu0 %v368
        %1068 = vmatprep.mubr.f32.mxu0 %v296
        %1069 = vmatmul.mubr.f32.gmra.mxu0 %v295
        %v1070 = vpop.f32.mrf.mxu0
        %v1071 = vadd.f32 %v707, %v1070
        %v1072 = vpop.f32.mrf.mxu0
        %v1073 = vadd.f32 %v711, %v1072
        %1074 = vdwg.mxu0
        %1075 = vmatprep.subr.mxu0 %v493
        %1076 = vmatpush1.msra.mxu0 %v492
        %1077 = vmatprep.subr.mxu0 %v489
        %1078 = vmatpush1.msra.mxu0 %v488
        %1079 = vmatprep.subr.mxu0 %v485
        %1080 = vmatpush1.msra.mxu0 %v484
        %1081 = vmatprep.subr.mxu0 %v481
        %1082 = vmatpush1.msra.mxu0 %v480
        %1083 = vmatprep.subr.mxu0 %v477
        %1084 = vmatpush1.msra.mxu0 %v476
        %1085 = vmatprep.subr.mxu0 %v473
        %1086 = vmatpush1.msra.mxu0 %v472
        %1087 = vmatprep.subr.mxu0 %v469
        %1088 = vmatpush1.msra.mxu0 %v468
        %1089 = vmatprep.subr.mxu0 %v465
        %1090 = vmatpush1.msra.mxu0 %v464
        %1091 = vmatprep.subr.mxu0 %v461
        %1092 = vmatpush1.msra.mxu0 %v460
        %1093 = vmatprep.subr.mxu0 %v457
        %1094 = vmatpush1.msra.mxu0 %v456
        %1095 = vmatprep.subr.mxu0 %v453
        %1096 = vmatpush1.msra.mxu0 %v452
        %1097 = vmatprep.subr.mxu0 %v449
        %1098 = vmatpush1.msra.mxu0 %v448
        %1099 = vmatprep.subr.mxu0 %v445
        %1100 = vmatpush1.msra.mxu0 %v444
        %1101 = vmatprep.subr.mxu0 %v441
        %1102 = vmatpush1.msra.mxu0 %v440
        %1103 = vmatprep.subr.mxu0 %v437
        %1104 = vmatpush1.msra.mxu0 %v436
        %1105 = vmatprep.subr.mxu0 %v433
        %1106 = vmatpush1.msra.mxu0 %v432
        %1107 = vmatprep.subr.mxu0 %v557
        %1108 = vmatpush2.msra.mxu0 %v556
        %1109 = vmatprep.subr.mxu0 %v553
        %1110 = vmatpush2.msra.mxu0 %v552
        %1111 = vmatprep.subr.mxu0 %v549
        %1112 = vmatpush2.msra.mxu0 %v548
        %1113 = vmatprep.subr.mxu0 %v545
        %1114 = vmatpush2.msra.mxu0 %v544
        %1115 = vmatprep.subr.mxu0 %v541
        %1116 = vmatpush2.msra.mxu0 %v540
        %1117 = vmatprep.subr.mxu0 %v537
        %1118 = vmatpush2.msra.mxu0 %v536
        %1119 = vmatprep.subr.mxu0 %v533
        %1120 = vmatpush2.msra.mxu0 %v532
        %1121 = vmatprep.subr.mxu0 %v529
        %1122 = vmatpush2.msra.mxu0 %v528
        %1123 = vmatprep.subr.mxu0 %v525
        %1124 = vmatpush2.msra.mxu0 %v524
        %1125 = vmatprep.subr.mxu0 %v521
        %1126 = vmatpush2.msra.mxu0 %v520
        %1127 = vmatprep.subr.mxu0 %v517
        %1128 = vmatpush2.msra.mxu0 %v516
        %1129 = vmatprep.subr.mxu0 %v513
        %1130 = vmatpush2.msra.mxu0 %v512
        %1131 = vmatprep.subr.mxu0 %v509
        %1132 = vmatpush2.msra.mxu0 %v508
        %1133 = vmatprep.subr.mxu0 %v505
        %1134 = vmatpush2.msra.mxu0 %v504
        %1135 = vmatprep.subr.mxu0 %v501
        %1136 = vmatpush2.msra.mxu0 %v500
        %1137 = vmatprep.subr.mxu0 %v497
        %1138 = vmatpush2.msra.mxu0 %v496
        %1139 = vmatprep.mubr.f32.mxu0 %v298
        %1140 = vmatmul.mubr.f32.gmra.mxu0 %v297
        %v1141 = vpop.f32.mrf.mxu0
        %v1142 = vadd.f32 %v1071, %v1141
        %v1143 = vpop.f32.mrf.mxu0
        %v1144 = vadd.f32 %v1073, %v1143
        %1145 = vdwg.mxu0
        %1146 = vmatprep.subr.mxu0 %v621
        %1147 = vmatpush1.msra.mxu0 %v620
        %1148 = vmatprep.subr.mxu0 %v617
        %1149 = vmatpush1.msra.mxu0 %v616
        %1150 = vmatprep.subr.mxu0 %v613
        %1151 = vmatpush1.msra.mxu0 %v612
        %1152 = vmatprep.subr.mxu0 %v609
        %1153 = vmatpush1.msra.mxu0 %v608
        %1154 = vmatprep.subr.mxu0 %v605
        %1155 = vmatpush1.msra.mxu0 %v604
        %1156 = vmatprep.subr.mxu0 %v601
        %1157 = vmatpush1.msra.mxu0 %v600
        %1158 = vmatprep.subr.mxu0 %v597
        %1159 = vmatpush1.msra.mxu0 %v596
        %1160 = vmatprep.subr.mxu0 %v593
        %1161 = vmatpush1.msra.mxu0 %v592
        %1162 = vmatprep.subr.mxu0 %v589
        %1163 = vmatpush1.msra.mxu0 %v588
        %1164 = vmatprep.subr.mxu0 %v585
        %1165 = vmatpush1.msra.mxu0 %v584
        %1166 = vmatprep.subr.mxu0 %v581
        %1167 = vmatpush1.msra.mxu0 %v580
        %1168 = vmatprep.subr.mxu0 %v577
        %1169 = vmatpush1.msra.mxu0 %v576
        %1170 = vmatprep.subr.mxu0 %v573
        %1171 = vmatpush1.msra.mxu0 %v572
        %1172 = vmatprep.subr.mxu0 %v569
        %1173 = vmatpush1.msra.mxu0 %v568
        %1174 = vmatprep.subr.mxu0 %v565
        %1175 = vmatpush1.msra.mxu0 %v564
        %1176 = vmatprep.subr.mxu0 %v561
        %1177 = vmatpush1.msra.mxu0 %v560
        %1178 = vmatprep.subr.mxu0 %v685
        %1179 = vmatpush2.msra.mxu0 %v684
        %1180 = vmatprep.subr.mxu0 %v681
        %1181 = vmatpush2.msra.mxu0 %v680
        %1182 = vmatprep.subr.mxu0 %v677
        %1183 = vmatpush2.msra.mxu0 %v676
        %1184 = vmatprep.subr.mxu0 %v673
        %1185 = vmatpush2.msra.mxu0 %v672
        %1186 = vmatprep.subr.mxu0 %v669
        %1187 = vmatpush2.msra.mxu0 %v668
        %1188 = vmatprep.subr.mxu0 %v665
        %1189 = vmatpush2.msra.mxu0 %v664
        %1190 = vmatprep.subr.mxu0 %v661
        %1191 = vmatpush2.msra.mxu0 %v660
        %1192 = vmatprep.subr.mxu0 %v657
        %1193 = vmatpush2.msra.mxu0 %v656
        %1194 = vmatprep.subr.mxu0 %v653
        %1195 = vmatpush2.msra.mxu0 %v652
        %1196 = vmatprep.subr.mxu0 %v649
        %1197 = vmatpush2.msra.mxu0 %v648
        %1198 = vmatprep.subr.mxu0 %v645
        %1199 = vmatpush2.msra.mxu0 %v644
        %1200 = vmatprep.subr.mxu0 %v641
        %1201 = vmatpush2.msra.mxu0 %v640
        %1202 = vmatprep.subr.mxu0 %v637
        %1203 = vmatpush2.msra.mxu0 %v636
        %1204 = vmatprep.subr.mxu0 %v633
        %1205 = vmatpush2.msra.mxu0 %v632
        %1206 = vmatprep.subr.mxu0 %v629
        %1207 = vmatpush2.msra.mxu0 %v628
        %1208 = vmatprep.subr.mxu0 %v625
        %1209 = vmatpush2.msra.mxu0 %v624
        %1210 = vmatprep.mubr.f32.mxu0 %v300
        %1211 = vmatmul.mubr.f32.gmra.mxu0 %v299
        %v1212 = vpop.f32.mrf.mxu0
        %v1213 = vadd.f32 %v1142, %v1212
        %v1214 = vpop.f32.mrf.mxu0
        %v1215 = vadd.f32 %v1144, %v1214
        %1216 = vdwg.mxu0
        %1217 = vmatprep.subr.mxu0 0.0
        %1218 = vmatpush1.msra.mxu0 0.0
        %1219 = vmatprep.subr.mxu0 0.0
        %1220 = vmatpush1.msra.mxu0 0.0
        %1221 = vmatprep.subr.mxu0 0.0
        %1222 = vmatpush1.msra.mxu0 0.0
        %1223 = vmatprep.subr.mxu0 0.0
        %1224 = vmatpush1.msra.mxu0 0.0
        %1225 = vmatprep.subr.mxu0 0.0
        %1226 = vmatpush1.msra.mxu0 0.0
        %1227 = vmatprep.subr.mxu0 0.0
        %1228 = vmatpush1.msra.mxu0 0.0
        %1229 = vmatprep.subr.mxu0 0.0
        %1230 = vmatpush1.msra.mxu0 0.0
        %1231 = vmatprep.subr.mxu0 0.0
        %1232 = vmatpush1.msra.mxu0 0.0
        %1233 = vmatprep.subr.mxu0 0.0
        %1234 = vmatpush1.msra.mxu0 0.0
        %1235 = vmatprep.subr.mxu0 0.0
        %1236 = vmatpush1.msra.mxu0 0.0
        %1237 = vmatprep.subr.mxu0 0.0
        %1238 = vmatpush1.msra.mxu0 0.0
        %1239 = vmatprep.subr.mxu0 0.0
        %1240 = vmatpush1.msra.mxu0 0.0
        %1241 = vmatprep.subr.mxu0 0.0
        %1242 = vmatpush1.msra.mxu0 0.0
        %1243 = vmatprep.subr.mxu0 0.0
        %1244 = vmatpush1.msra.mxu0 0.0
        %1245 = vmatprep.subr.mxu0 %v693
        %1246 = vmatpush1.msra.mxu0 %v692
        %1247 = vmatprep.subr.mxu0 %v689
        %1248 = vmatpush1.msra.mxu0 %v688
        %1249 = vmatprep.subr.mxu0 0.0
        %1250 = vmatpush2.msra.mxu0 0.0
        %1251 = vmatprep.subr.mxu0 0.0
        %1252 = vmatpush2.msra.mxu0 0.0
        %1253 = vmatprep.subr.mxu0 0.0
        %1254 = vmatpush2.msra.mxu0 0.0
        %1255 = vmatprep.subr.mxu0 0.0
        %1256 = vmatpush2.msra.mxu0 0.0
        %1257 = vmatprep.subr.mxu0 0.0
        %1258 = vmatpush2.msra.mxu0 0.0
        %1259 = vmatprep.subr.mxu0 0.0
        %1260 = vmatpush2.msra.mxu0 0.0
        %1261 = vmatprep.subr.mxu0 0.0
        %1262 = vmatpush2.msra.mxu0 0.0
        %1263 = vmatprep.subr.mxu0 0.0
        %1264 = vmatpush2.msra.mxu0 0.0
        %1265 = vmatprep.subr.mxu0 0.0
        %1266 = vmatpush2.msra.mxu0 0.0
        %1267 = vmatprep.subr.mxu0 0.0
        %1268 = vmatpush2.msra.mxu0 0.0
        %1269 = vmatprep.subr.mxu0 0.0
        %1270 = vmatpush2.msra.mxu0 0.0
        %1271 = vmatprep.subr.mxu0 0.0
        %1272 = vmatpush2.msra.mxu0 0.0
        %1273 = vmatprep.subr.mxu0 0.0
        %1274 = vmatpush2.msra.mxu0 0.0
        %1275 = vmatprep.subr.mxu0 0.0
        %1276 = vmatpush2.msra.mxu0 0.0
        %1277 = vmatprep.subr.mxu0 0.0
        %1278 = vmatpush2.msra.mxu0 0.0
        %1279 = vmatprep.subr.mxu0 0.0
        %1280 = vmatpush2.msra.mxu0 0.0
        %1281 = vmatprep.mubr.f32.mxu0 0.0
        %1282 = vmatmul.mubr.f32.gmra.mxu0 %v718
        %v1283 = vpop.f32.mrf.mxu0
        %v1284 = vadd.f32 %v1213, %v1283
        %v1285 = vpop.f32.mrf.mxu0
        %v1286 = vadd.f32 %v1215, %v1285
        %1287 = vdwg.mxu0
        %v1288 = vtanh.pop %v1000
        %v1289 = vtanh.pop %v1002
        %v1290 = vtanh.pop %v1284
        %v1291 = vtanh.pop %v1286
        %v1292 = vld [vmem:[#allocation8] sm:$0xff]
        %v1293 = vld [vmem:[#allocation8 + $0x8] sm:$0xff]
        %v1294 = vld [vmem:[#allocation8 + $0x10] sm:$0xff]
        %v1295 = vld [vmem:[#allocation8 + $0x18] sm:$0xff]
        %v1296 = vld [vmem:[#allocation8 + $0x20] sm:$0xff]
        %v1297 = vld [vmem:[#allocation8 + $0x28] sm:$0xff]
        %v1298 = vld [vmem:[#allocation8 + $0x30] sm:$0xff]
        %v1299 = vld [vmem:[#allocation8 + $0x38] sm:$0xff]
        %v1300 = vld [vmem:[#allocation8 + $0x40] sm:$0xff]
        %v1301 = vld [vmem:[#allocation8 + $0x48] sm:$0xff]
        %v1302 = vld [vmem:[#allocation8 + $0x50] sm:$0xff]
        %v1303 = vld [vmem:[#allocation8 + $0x58] sm:$0xff]
        %v1304 = vld [vmem:[#allocation8 + $0x60] sm:$0xff]
        %v1305 = vld [vmem:[#allocation8 + $0x68] sm:$0xff]
        %v1306 = vld [vmem:[#allocation8 + $0x70] sm:$0xff]
        %v1307 = vld [vmem:[#allocation8 + $0x78] sm:$0xff]
        %v1308 = vld [vmem:[#allocation8 + $0x80] sm:$0xff]
        %v1309 = vld [vmem:[#allocation8 + $0x88] sm:$0xff]
        %v1310 = vld [vmem:[#allocation8 + $0x90] sm:$0xff]
        %v1311 = vld [vmem:[#allocation8 + $0x98] sm:$0xff]
        %v1312 = vld [vmem:[#allocation8 + $0xa0] sm:$0xff]
        %v1313 = vld [vmem:[#allocation8 + $0xa8] sm:$0xff]
        %v1314 = vld [vmem:[#allocation8 + $0xb0] sm:$0xff]
        %v1315 = vld [vmem:[#allocation8 + $0xb8] sm:$0xff]
        %v1316 = vld [vmem:[#allocation8 + $0xc0] sm:$0xff]
        %v1317 = vld [vmem:[#allocation8 + $0xc8] sm:$0xff]
        %v1318 = vld [vmem:[#allocation8 + $0xd0] sm:$0xff]
        %v1319 = vld [vmem:[#allocation8 + $0xd8] sm:$0xff]
        %v1320 = vld [vmem:[#allocation8 + $0xe0] sm:$0xff]
        %v1321 = vld [vmem:[#allocation8 + $0xe8] sm:$0xff]
        %v1322 = vld [vmem:[#allocation8 + $0xf0] sm:$0xff]
        %v1323 = vld [vmem:[#allocation8 + $0xf8] sm:$0xff]
        %v1324 = vld [vmem:[#allocation8 + $0x100] sm:$0xff]
        %v1325 = vld [vmem:[#allocation8 + $0x108] sm:$0xff]
        %v1326 = vld [vmem:[#allocation8 + $0x110] sm:$0xff]
        %v1327 = vld [vmem:[#allocation8 + $0x118] sm:$0xff]
        %v1328 = vld [vmem:[#allocation8 + $0x120] sm:$0xff]
        %v1329 = vld [vmem:[#allocation8 + $0x128] sm:$0xff]
        %v1330 = vld [vmem:[#allocation8 + $0x130] sm:$0xff]
        %v1331 = vld [vmem:[#allocation8 + $0x138] sm:$0xff]
        %v1332 = vld [vmem:[#allocation8 + $0x140] sm:$0xff]
        %v1333 = vld [vmem:[#allocation8 + $0x148] sm:$0xff]
        %v1334 = vld [vmem:[#allocation8 + $0x150] sm:$0xff]
        %v1335 = vld [vmem:[#allocation8 + $0x158] sm:$0xff]
        %v1336 = vld [vmem:[#allocation8 + $0x160] sm:$0xff]
        %v1337 = vld [vmem:[#allocation8 + $0x168] sm:$0xff]
        %v1338 = vld [vmem:[#allocation8 + $0x170] sm:$0xff]
        %v1339 = vld [vmem:[#allocation8 + $0x178] sm:$0xff]
        %v1340 = vld [vmem:[#allocation8 + $0x180] sm:$0xff]
        %v1341 = vld [vmem:[#allocation8 + $0x188] sm:$0xff]
        %v1342 = vld [vmem:[#allocation8 + $0x190] sm:$0xff]
        %v1343 = vld [vmem:[#allocation8 + $0x198] sm:$0xff]
        %v1344 = vld [vmem:[#allocation8 + $0x1a0] sm:$0xff]
        %v1345 = vld [vmem:[#allocation8 + $0x1a8] sm:$0xff]
        %v1346 = vld [vmem:[#allocation8 + $0x1b0] sm:$0xff]
        %v1347 = vld [vmem:[#allocation8 + $0x1b8] sm:$0xff]
        %v1348 = vld [vmem:[#allocation8 + $0x1c0] sm:$0xff]
        %v1349 = vld [vmem:[#allocation8 + $0x1c8] sm:$0xff]
        %v1350 = vld [vmem:[#allocation8 + $0x1d0] sm:$0xff]
        %v1351 = vld [vmem:[#allocation8 + $0x1d8] sm:$0xff]
        %v1352 = vld [vmem:[#allocation8 + $0x1e0] sm:$0xff]
        %v1353 = vld [vmem:[#allocation8 + $0x1e8] sm:$0xff]
        %v1354 = vld [vmem:[#allocation8 + $0x1f0] sm:$0xf]
        %v1355 = vld [vmem:[#allocation10] sm:$0x1]
        %v1357 = vlaneseq
        %v1358 = vshrl.u32 %v1357, 7
        %v1359 = vsub.s32 0, %v1358
        %v1360 = vrot.slane %v1355, %v1359
        %vm1362 = vcmask 949248
        %v1364 = vsel %vm1362, %v1291, 0
        %vm1366 = vcmask 1043456
        %v1368 = vsel %vm1366, %v1354, 0
        %1370 = vmatprep.subr.mxu0 0.0
        %1371 = vmatpush1.msra.mxu0 %v1307
        %1372 = vmatprep.subr.mxu0 0.0
        %1373 = vmatpush1.msra.mxu0 %v1306
        %1374 = vmatprep.subr.mxu0 0.0
        %1375 = vmatpush1.msra.mxu0 %v1305
        %1376 = vmatprep.subr.mxu0 0.0
        %1377 = vmatpush1.msra.mxu0 %v1304
        %1378 = vmatprep.subr.mxu0 0.0
        %1379 = vmatpush1.msra.mxu0 %v1303
        %1380 = vmatprep.subr.mxu0 0.0
        %1381 = vmatpush1.msra.mxu0 %v1302
        %1382 = vmatprep.subr.mxu0 0.0
        %1383 = vmatpush1.msra.mxu0 %v1301
        %1384 = vmatprep.subr.mxu0 0.0
        %1385 = vmatpush1.msra.mxu0 %v1300
        %1386 = vmatprep.subr.mxu0 0.0
        %1387 = vmatpush1.msra.mxu0 %v1299
        %1388 = vmatprep.subr.mxu0 0.0
        %1389 = vmatpush1.msra.mxu0 %v1298
        %1390 = vmatprep.subr.mxu0 0.0
        %1391 = vmatpush1.msra.mxu0 %v1297
        %1392 = vmatprep.subr.mxu0 0.0
        %1393 = vmatpush1.msra.mxu0 %v1296
        %1394 = vmatprep.subr.mxu0 0.0
        %1395 = vmatpush1.msra.mxu0 %v1295
        %1396 = vmatprep.subr.mxu0 0.0
        %1397 = vmatpush1.msra.mxu0 %v1294
        %1398 = vmatprep.subr.mxu0 0.0
        %1399 = vmatpush1.msra.mxu0 %v1293
        %1400 = vmatprep.subr.mxu0 0.0
        %1401 = vmatpush1.msra.mxu0 %v1292
        %1402 = vmatprep.subr.mxu0 0.0
        %1403 = vmatpush2.msra.mxu0 %v1323
        %1404 = vmatprep.subr.mxu0 0.0
        %1405 = vmatpush2.msra.mxu0 %v1322
        %1406 = vmatprep.subr.mxu0 0.0
        %1407 = vmatpush2.msra.mxu0 %v1321
        %1408 = vmatprep.subr.mxu0 0.0
        %1409 = vmatpush2.msra.mxu0 %v1320
        %1410 = vmatprep.subr.mxu0 0.0
        %1411 = vmatpush2.msra.mxu0 %v1319
        %1412 = vmatprep.subr.mxu0 0.0
        %1413 = vmatpush2.msra.mxu0 %v1318
        %1414 = vmatprep.subr.mxu0 0.0
        %1415 = vmatpush2.msra.mxu0 %v1317
        %1416 = vmatprep.subr.mxu0 0.0
        %1417 = vmatpush2.msra.mxu0 %v1316
        %1418 = vmatprep.subr.mxu0 0.0
        %1419 = vmatpush2.msra.mxu0 %v1315
        %1420 = vmatprep.subr.mxu0 0.0
        %1421 = vmatpush2.msra.mxu0 %v1314
        %1422 = vmatprep.subr.mxu0 0.0
        %1423 = vmatpush2.msra.mxu0 %v1313
        %1424 = vmatprep.subr.mxu0 0.0
        %1425 = vmatpush2.msra.mxu0 %v1312
        %1426 = vmatprep.subr.mxu0 0.0
        %1427 = vmatpush2.msra.mxu0 %v1311
        %1428 = vmatprep.subr.mxu0 0.0
        %1429 = vmatpush2.msra.mxu0 %v1310
        %1430 = vmatprep.subr.mxu0 0.0
        %1431 = vmatpush2.msra.mxu0 %v1309
        %1432 = vmatprep.subr.mxu0 0.0
        %1433 = vmatpush2.msra.mxu0 %v1308
        %1434 = vmatprep.mubr.f32.mxu0 %v1289
        %1435 = vmatmul.mubr.f32.gmra.mxu0 %v1288
        %v1436 = vpop.f32.mrf.mxu0
        %v1437 = vadd.f32 %v1360, %v1436
        %v1438 = vpop.f32.mrf.mxu0
        %1439 = vdwg.mxu0
        %1440 = vmatprep.subr.mxu0 0.0
        %1441 = vmatpush1.msra.mxu0 %v1339
        %1442 = vmatprep.subr.mxu0 0.0
        %1443 = vmatpush1.msra.mxu0 %v1338
        %1444 = vmatprep.subr.mxu0 0.0
        %1445 = vmatpush1.msra.mxu0 %v1337
        %1446 = vmatprep.subr.mxu0 0.0
        %1447 = vmatpush1.msra.mxu0 %v1336
        %1448 = vmatprep.subr.mxu0 0.0
        %1449 = vmatpush1.msra.mxu0 %v1335
        %1450 = vmatprep.subr.mxu0 0.0
        %1451 = vmatpush1.msra.mxu0 %v1334
        %1452 = vmatprep.subr.mxu0 0.0
        %1453 = vmatpush1.msra.mxu0 %v1333
        %1454 = vmatprep.subr.mxu0 0.0
        %1455 = vmatpush1.msra.mxu0 %v1332
        %1456 = vmatprep.subr.mxu0 0.0
        %1457 = vmatpush1.msra.mxu0 %v1331
        %1458 = vmatprep.subr.mxu0 0.0
        %1459 = vmatpush1.msra.mxu0 %v1330
        %1460 = vmatprep.subr.mxu0 0.0
        %1461 = vmatpush1.msra.mxu0 %v1329
        %1462 = vmatprep.subr.mxu0 0.0
        %1463 = vmatpush1.msra.mxu0 %v1328
        %1464 = vmatprep.subr.mxu0 0.0
        %1465 = vmatpush1.msra.mxu0 %v1327
        %1466 = vmatprep.subr.mxu0 0.0
        %1467 = vmatpush1.msra.mxu0 %v1326
        %1468 = vmatprep.subr.mxu0 0.0
        %1469 = vmatpush1.msra.mxu0 %v1325
        %1470 = vmatprep.subr.mxu0 0.0
        %1471 = vmatpush1.msra.mxu0 %v1324
        %1472 = vmatprep.subr.mxu0 0.0
        %1473 = vmatpush2.msra.mxu0 0.0
        %1474 = vmatprep.subr.mxu0 0.0
        %1475 = vmatpush2.msra.mxu0 %v1368
        %1476 = vmatprep.subr.mxu0 0.0
        %1477 = vmatpush2.msra.mxu0 %v1353
        %1478 = vmatprep.subr.mxu0 0.0
        %1479 = vmatpush2.msra.mxu0 %v1352
        %1480 = vmatprep.subr.mxu0 0.0
        %1481 = vmatpush2.msra.mxu0 %v1351
        %1482 = vmatprep.subr.mxu0 0.0
        %1483 = vmatpush2.msra.mxu0 %v1350
        %1484 = vmatprep.subr.mxu0 0.0
        %1485 = vmatpush2.msra.mxu0 %v1349
        %1486 = vmatprep.subr.mxu0 0.0
        %1487 = vmatpush2.msra.mxu0 %v1348
        %1488 = vmatprep.subr.mxu0 0.0
        %1489 = vmatpush2.msra.mxu0 %v1347
        %1490 = vmatprep.subr.mxu0 0.0
        %1491 = vmatpush2.msra.mxu0 %v1346
        %1492 = vmatprep.subr.mxu0 0.0
        %1493 = vmatpush2.msra.mxu0 %v1345
        %1494 = vmatprep.subr.mxu0 0.0
        %1495 = vmatpush2.msra.mxu0 %v1344
        %1496 = vmatprep.subr.mxu0 0.0
        %1497 = vmatpush2.msra.mxu0 %v1343
        %1498 = vmatprep.subr.mxu0 0.0
        %1499 = vmatpush2.msra.mxu0 %v1342
        %1500 = vmatprep.subr.mxu0 0.0
        %1501 = vmatpush2.msra.mxu0 %v1341
        %1502 = vmatprep.subr.mxu0 0.0
        %1503 = vmatpush2.msra.mxu0 %v1340
        %1504 = vmatprep.mubr.f32.mxu0 %v1364
        %1505 = vmatmul.mubr.f32.gmra.mxu0 %v1290
        %v1506 = vpop.f32.mrf.mxu0
        %v1507 = vadd.f32 %v1437, %v1506
        %v1508 = vpop.f32.mrf.mxu0
        %1509 = vdwg.mxu0
        %1510 = vst [vmem:[%s294] sm:$0xff] %v1507
        %s1511 = sand.u32 %s142, 1
        %s1512 = scalar_lea.sflag [#allocation4], %s1511
        %s1513 = sand.u32 %s142, 1
        %s1514 = smul.addr %s1513, 8
        %s1515 = scalar_lea.vmem [#allocation11], %s1514
        // Predicated region
        $region61: #{tpu_custom_call.1} parent=39 // pred_check
          %p1516 = pneg %p152
        $region62: #{tpu_custom_call.1} parent=39 // pred_check_branch
          %1518 = sbr.rel (%p1516) target = $region64
        $region63: #{tpu_custom_call.1} parent=39 // pred_region
          %s1520 = ssub.s32 128, 128
          %1521 = vsyncadd %s1512, %s1520
          %s1522 = smul.addr %s24, 128
          %s1523 = scalar_lea.hbm %s5, %s1522
          %s1525 = sshll.u32 %s1515, 4
          %s1526 = int_to_ptr.vmem [resolvable:$true] %s1525
          %1528 = dma.vmem_to_hbm [thread:$0]  %s1526, 128, %s1523, %s1512
        $region64: #{tpu_custom_call.1} parent=39 // pred_fallthru
          _
      $region40: #{tpu_custom_call.1} parent=5 // pred_fallthru
        _
      %p1529 = scmp.le.s32.totalorder 2, %s19
      // Predicated region
      $region65: #{tpu_custom_call.1} parent=5 // pred_check
        %p1530 = pneg %p1529
      $region66: #{tpu_custom_call.1} parent=5 // pred_check_branch
        %1532 = sbr.rel (%p1530) target = $region68
      $region67: #{tpu_custom_call.1} parent=5 // pred_region
        %s1533 = ssub.s32 %s19, 2
        // Predicated region
        $region69: #{tpu_custom_call.1} parent=67 // pred_check
          %p1534 = pneg %p158
        $region70: #{tpu_custom_call.1} parent=67 // pred_check_branch
          %1536 = sbr.rel (%p1534) target = $region72
        $region71: #{tpu_custom_call.1} parent=67 // pred_region
          %s1537 = sand.u32 %s143, 1
          %s1538 = scalar_lea.sflag [#allocation4], %s1537
          %s1539 = sand.u32 %s143, 1
          %s1540 = smul.addr %s1539, 8
          %s1541 = scalar_lea.vmem [#allocation11], %s1540
          %1542 = dma.done %s1538, 128
        $region72: #{tpu_custom_call.1} parent=67 // pred_fallthru
          _
      $region68: #{tpu_custom_call.1} parent=5 // pred_fallthru
        _
    $region6: #{tpu_custom_call.1} parent=1 // loop_footer
      %s23 = sadd.s32 1, %s19
    $region7: #{tpu_custom_call.1} parent=1 // loop_footer_branch
      %18 = sbr.rel target = $region3
    $region8: #{tpu_custom_call.1} parent=1 // loop_exit
      _
    %1543 = vsyncpa [#allocation3], 1
    %s1544 = scalar_lea.sflag [#allocation3], 1
    %1545 = vsyncpa %s1544, 1
    %1546 = vsyncpa [#allocation6], 1
    %1547 = vsyncpa [#allocation9], 1
    %1548 = vsyncpa [#allocation4], 1
    %s1549 = scalar_lea.sflag [#allocation4], 1
    %1550 = vsyncpa %s1549, 1

</llo_original>
